<compile_context>
chip_gen: v5e
topology: v5e:2x2
jax: 0.10.0
libtpu: 0.0.40
codegen_flags: <defaults>
</compile_context>

<pallas_src>
import math
from functools import partial

import jax
import jax.numpy as jnp
from jax.experimental import pallas as pl
from jax.experimental.pallas import tpu as pltpu

CFG = dict(
    vocab_size=128,
    context_length=16,
    emb_dim=32,
    n_heads=4,
    num_layers=2,
    dropout_rate=0.0,   # identity -> no-op in kernel
    qkv_bias=False,
)
EPS = 1e-5
NEG_INF = -1e30

# Row layout of the packed per-layer vector slab vecs[l] : [8, 4D]
_N1S, _N1B, _N2S, _N2B, _BO, _B2, _B1 = 0, 1, 2, 3, 4, 5, 6


# ---------------------------------------------------------------------------
# In-kernel helpers (traced inside the Pallas body; fp32 VPU/EUP math)
# ---------------------------------------------------------------------------
def _layernorm(x, scale, shift):
    # PyTorch LayerNorm: mean/var over last dim, unbiased=False, eps=1e-5
    mean = jnp.mean(x, axis=-1, keepdims=True)
    var = jnp.mean((x - mean) ** 2, axis=-1, keepdims=True)
    return (x - mean) / jnp.sqrt(var + EPS) * scale + shift


def _gelu(x):
    # tanh-approximate GELU (as in the reference FeedForward block)
    c = math.sqrt(2.0 / math.pi)
    return 0.5 * x * (1.0 + jnp.tanh(c * (x + 0.044715 * x ** 3)))


# ---------------------------------------------------------------------------
# Fused GPT kernel: all layers + final norm + LM head, single grid step.
# Activation is [M, D] with M = B*T (batch folded into the token axis).
# ---------------------------------------------------------------------------
def gpt_fused_kernel(x0_ref, bias_ref, wqkv_ref, wo_ref, w1_ref, w2_ref,
                     vecs_ref, fnorm_ref, wout_ref, logits_ref,
                     *, num_heads, num_layers):
    x = x0_ref[...].astype(jnp.float32)                  # [M, D] fp32 carry
    M, D = x.shape
    H = num_heads
    hd = D // H
    scale = 1.0 / math.sqrt(hd)
    bias = bias_ref[...]                                 # [M, M] block-diag causal

    for l in range(num_layers):                          # static loop, weights VMEM-resident
        vecs = vecs_ref[l]                               # [8, 4D] fp32
        n1s = vecs[_N1S:_N1S + 1, :D]
        n1b = vecs[_N1B:_N1B + 1, :D]
        n2s = vecs[_N2S:_N2S + 1, :D]
        n2b = vecs[_N2B:_N2B + 1, :D]
        bo = vecs[_BO:_BO + 1, :D]
        b2 = vecs[_B2:_B2 + 1, :D]
        b1 = vecs[_B1:_B1 + 1, :]

        # ---- attention sub-layer (pre-norm, residual) ----
        h = _layernorm(x, n1s, n1b).astype(jnp.bfloat16)              # cast once
        qkv = jnp.dot(h, wqkv_ref[l], preferred_element_type=jnp.float32)  # [M, 3D]
        qkvb = qkv.astype(jnp.bfloat16)                               # cast once

        # per-head score matmuls, softmax batched across all heads
        s = jnp.stack(
            [jnp.einsum('qd,kd->qk',
                        qkvb[:, hh * hd:(hh + 1) * hd],               # q_h
                        qkvb[:, D + hh * hd:D + (hh + 1) * hd],       # k_h
                        preferred_element_type=jnp.float32)
             for hh in range(H)], axis=0)                             # [H, M, M]
        s = s * scale + bias[None]
        s = s - jnp.max(s, axis=-1, keepdims=True)
        p = jnp.exp(s)
        p = (p * pl.reciprocal(jnp.sum(p, axis=-1, keepdims=True), approx=True)
             ).astype(jnp.bfloat16)                                   # cast once

        # head contexts placed in their contiguous lane slices, then ONE W_o matmul
        ctx = jnp.concatenate(
            [jnp.dot(p[hh],
                     qkvb[:, 2 * D + hh * hd:2 * D + (hh + 1) * hd],  # v_h
                     preferred_element_type=jnp.float32)
             for hh in range(H)], axis=-1).astype(jnp.bfloat16)       # [M, D]
        attn = jnp.dot(ctx, wo_ref[l], preferred_element_type=jnp.float32)
        x = x + attn + bo

        # ---- feed-forward sub-layer (pre-norm, residual) ----
        h = _layernorm(x, n2s, n2b).astype(jnp.bfloat16)
        hm = jnp.dot(h, w1_ref[l], preferred_element_type=jnp.float32) + b1
        hm = _gelu(hm).astype(jnp.bfloat16)
        ff = jnp.dot(hm, w2_ref[l], preferred_element_type=jnp.float32)
        x = x + ff + b2

    # ---- final norm + LM head (V = 128 -> lane-dense output) ----
    hf = _layernorm(x, fnorm_ref[0:1, :], fnorm_ref[1:2, :]).astype(jnp.bfloat16)
    logits_ref[...] = jnp.dot(hf, wout_ref[...],
                              preferred_element_type=jnp.float32
                              ).astype(logits_ref.dtype)


# ---------------------------------------------------------------------------
# Wrapper: one pallas_call, single grid step, everything VMEM-resident
# ---------------------------------------------------------------------------
def gpt_fused_forward(x0, bias, wqkv, wo, w1, w2, vecs, fnorm, w_out,
                      *, num_heads):
    M, D = x0.shape
    L = wqkv.shape[0]
    V = w_out.shape[1]

    def full(shape):
        return pl.BlockSpec(shape, lambda i, _s=shape: (0,) * len(_s))

    in_specs = [
        full((M, D)),            # folded embedding output
        full((M, M)),            # block-diagonal causal additive bias
        full((L, D, 3 * D)),     # fused QKV weights (all layers)
        full((L, D, D)),         # attention out-proj weights
        full((L, D, 4 * D)),     # MLP W1
        full((L, 4 * D, D)),     # MLP W2
        full((L, 8, 4 * D)),     # packed per-layer vectors (norm scale/shift, biases)
        full((2, D)),            # final norm scale/shift
        full((D, V)),            # LM head weight
    ]
    out_spec = full((M, V))

    return pl.pallas_call(
        partial(gpt_fused_kernel, num_heads=num_heads, num_layers=L),
        out_shape=jax.ShapeDtypeStruct((M, V), jnp.float32),
        grid_spec=pltpu.PrefetchScalarGridSpec(
            num_scalar_prefetch=0,
            grid=(1,),
            in_specs=in_specs,
            out_specs=out_spec,
        ),
        compiler_params=pltpu.CompilerParams(
            dimension_semantics=("arbitrary",)),
    )(x0, bias, wqkv, wo, w1, w2, vecs, fnorm, w_out)


# ---------------------------------------------------------------------------
# Parameter init (deterministic, synthetic) — packed / stacked for the kernel
# ---------------------------------------------------------------------------
def init_params(key, cfg):
    D, V, C = cfg['emb_dim'], cfg['vocab_size'], cfg['context_length']
    L = cfg['num_layers']

    keys = iter(jax.random.split(key, 3 + 9 * L))

    def nrm(shape):
        return (0.02 * jax.random.normal(next(keys), shape)).astype(jnp.float32)

    tok_emb = nrm((V, D))
    pos_emb = nrm((C, D))
    w_out = nrm((D, V))

    wqkv_l, wo_l, w1_l, w2_l, vecs_l = [], [], [], [], []
    for _ in range(L):
        wq, wk, wv = nrm((D, D)), nrm((D, D)), nrm((D, D))
        wo = nrm((D, D))
        w1, w2 = nrm((D, 4 * D)), nrm((4 * D, D))
        bo, b1, b2 = nrm((D,)), nrm((4 * D,)), nrm((D,))

        wqkv_l.append(jnp.concatenate([wq, wk, wv], axis=1))     # [D, 3D]
        wo_l.append(wo)                                          # [D, D]
        w1_l.append(w1)
        w2_l.append(w2)

        vl = jnp.zeros((8, 4 * D), jnp.float32)
        vl = vl.at[_N1S, :D].set(1.0)          # norm1 scale
        vl = vl.at[_N2S, :D].set(1.0)          # norm2 scale
        vl = vl.at[_BO, :D].set(bo)            # attn out-proj bias
        vl = vl.at[_B2, :D].set(b2)            # MLP second bias
        vl = vl.at[_B1, :].set(b1)             # MLP first bias
        vecs_l.append(vl)                      # shift rows stay zero

    return {
        'tok_emb': tok_emb,
        'pos_emb': pos_emb,
        'wqkv': jnp.stack(wqkv_l).astype(jnp.bfloat16),    # [L, D, 3D]
        'wo':   jnp.stack(wo_l).astype(jnp.bfloat16),      # [L, D, D]
        'w1':   jnp.stack(w1_l).astype(jnp.bfloat16),      # [L, D, 4D]
        'w2':   jnp.stack(w2_l).astype(jnp.bfloat16),      # [L, 4D, D]
        'vecs': jnp.stack(vecs_l),                         # [L, 8, 4D] fp32
        'fnorm': jnp.stack([jnp.ones((D,), jnp.float32),
                            jnp.zeros((D,), jnp.float32)]),  # [2, D]
        'w_out': w_out.astype(jnp.bfloat16),               # [D, V]
    }


def gpt_forward(tokens, params, cfg):
    B, T = tokens.shape
    D = cfg['emb_dim']
    # embedding gathers (plain-JAX glue); dropout(p=0.0) -> identity
    tok = jnp.take(params['tok_emb'], tokens, axis=0)          # [B, T, D]
    pos = params['pos_emb'][:T][None, :, :]                    # [1, T, D]
    x0 = (tok + pos).astype(jnp.float32).reshape(B * T, D)     # batch folded into M

    # block-diagonal causal additive bias (layer-invariant, hoisted)
    M = B * T
    row = jnp.arange(M)[:, None]
    col = jnp.arange(M)[None, :]
    same_batch = (row // T) == (col // T)
    causal = col <= row
    bias = jnp.where(same_batch & causal, 0.0, NEG_INF).astype(jnp.float32)

    logits = gpt_fused_forward(x0, bias, params['wqkv'], params['wo'],
                               params['w1'], params['w2'], params['vecs'],
                               params['fnorm'], params['w_out'],
                               num_heads=cfg['n_heads'])
    return logits.reshape(B, T, -1)


# ---------------------------------------------------------------------------
# Pure-JAX reference (same bf16-stored weights) for a correctness check
# ---------------------------------------------------------------------------
def gpt_reference(tokens, params, cfg):
    D, H = cfg['emb_dim'], cfg['n_heads']
    hd = D // H
    B, T = tokens.shape
    x = (jnp.take(params['tok_emb'], tokens, axis=0)
         + params['pos_emb'][:T][None]).astype(jnp.float32)
    row = jnp.arange(T)[:, None]
    col = jnp.arange(T)[None, :]
    mask = col <= row

    def ln(z, s, b):
        m = z.mean(-1, keepdims=True)
        v = ((z - m) ** 2).mean(-1, keepdims=True)
        return (z - m) / jnp.sqrt(v + EPS) * s + b

    L = params['wqkv'].shape[0]
    for l in range(L):
        wqkv = params['wqkv'][l].astype(jnp.float32)
        wo = params['wo'][l].astype(jnp.float32)
        w1 = params['w1'][l].astype(jnp.float32)
        w2 = params['w2'][l].astype(jnp.float32)
        vc = params['vecs'][l]
        h = ln(x, vc[_N1S, :D], vc[_N1B, :D])
        qkv = h @ wqkv
        q, k, v = qkv[..., :D], qkv[..., D:2 * D], qkv[..., 2 * D:]
        qh = q.reshape(B, T, H, hd).transpose(0, 2, 1, 3)
        kh = k.reshape(B, T, H, hd).transpose(0, 2, 1, 3)
        vh = v.reshape(B, T, H, hd).transpose(0, 2, 1, 3)
        s = jnp.einsum('bhqd,bhkd->bhqk', qh, kh) / math.sqrt(hd)
        s = jnp.where(mask, s, -jnp.inf)
        p = jax.nn.softmax(s, axis=-1)
        ctx = jnp.einsum('bhqk,bhkd->bhqd', p, vh).transpose(0, 2, 1, 3)
        x = x + ctx.reshape(B, T, D) @ wo + vc[_BO, :D]
        h = ln(x, vc[_N2S, :D], vc[_N2B, :D])
        h = _gelu(h @ w1 + vc[_B1, :])
        x = x + h @ w2 + vc[_B2, :D]
    hf = ln(x, params['fnorm'][0], params['fnorm'][1])
    return hf @ params['w_out'].astype(jnp.float32)


if __name__ == "__main__":
    key = jax.random.PRNGKey(0)
    k_params, k_tok = jax.random.split(key)

    params = init_params(k_params, CFG)

    B, T = 2, 8
    tokens = jax.random.randint(k_tok, (B, T), 0, CFG['vocab_size'],
                                dtype=jnp.int32)

    logits = gpt_forward(tokens, params, CFG)
    logits = jax.block_until_ready(logits)

    assert logits.shape == (B, T, CFG['vocab_size'])
    assert bool(jnp.all(jnp.isfinite(logits)))

    ref = gpt_reference(tokens, params, CFG)
    max_err = float(jnp.max(jnp.abs(logits - ref)))
    # generous tolerance: bf16 matmul operands + approx reciprocal in softmax
    assert max_err < 5e-2, f"max abs err vs reference too large: {max_err}"

    print("KERNEL_OK")
</pallas_src>

<mosaic_0001>
module attributes {stable_mosaic.version = 11 : i64} {
  func.func @gpt_fused_kernel(%arg0: i32, %arg1: memref<16x32xf32, #tpu.memory_space<vmem>>, %arg2: memref<16x16xf32, #tpu.memory_space<vmem>>, %arg3: memref<2x32x96xbf16, #tpu.memory_space<vmem>>, %arg4: memref<2x32x32xbf16, #tpu.memory_space<vmem>>, %arg5: memref<2x32x128xbf16, #tpu.memory_space<vmem>>, %arg6: memref<2x128x32xbf16, #tpu.memory_space<vmem>>, %arg7: memref<2x8x128xf32, #tpu.memory_space<vmem>>, %arg8: memref<2x32xf32, #tpu.memory_space<vmem>>, %arg9: memref<32x128xbf16, #tpu.memory_space<vmem>>, %arg10: memref<16x128xf32, #tpu.memory_space<vmem>>) attributes {dimension_semantics = [#tpu.dimension_semantics<arbitrary>], iteration_bounds = array<i64: 1>, scalar_prefetch = 0 : i64, scratch_operands = 0 : i64, tpu.core_type = #tpu.core_type<tc>, window_params = [{pipeline_mode = #tpu.pipeline_mode<synchronous>, transform_indices = @transform_0, window_bounds = array<i64: 16, 32>}, {pipeline_mode = #tpu.pipeline_mode<synchronous>, transform_indices = @transform_1, window_bounds = array<i64: 16, 16>}, {pipeline_mode = #tpu.pipeline_mode<synchronous>, transform_indices = @transform_2, window_bounds = array<i64: 2, 32, 96>}, {pipeline_mode = #tpu.pipeline_mode<synchronous>, transform_indices = @transform_3, window_bounds = array<i64: 2, 32, 32>}, {pipeline_mode = #tpu.pipeline_mode<synchronous>, transform_indices = @transform_4, window_bounds = array<i64: 2, 32, 128>}, {pipeline_mode = #tpu.pipeline_mode<synchronous>, transform_indices = @transform_5, window_bounds = array<i64: 2, 128, 32>}, {pipeline_mode = #tpu.pipeline_mode<synchronous>, transform_indices = @transform_6, window_bounds = array<i64: 2, 8, 128>}, {pipeline_mode = #tpu.pipeline_mode<synchronous>, transform_indices = @transform_7, window_bounds = array<i64: 2, 32>}, {pipeline_mode = #tpu.pipeline_mode<synchronous>, transform_indices = @transform_8, window_bounds = array<i64: 32, 128>}, {pipeline_mode = #tpu.pipeline_mode<synchronous>, transform_indices = @transform_9, window_bounds = array<i64: 16, 128>}]} {
    %c0 = arith.constant 0 : index
    %c0_0 = arith.constant 0 : index
    %0 = vector.load %arg1[%c0, %c0_0] : memref<16x32xf32, #tpu.memory_space<vmem>>, vector<16x32xf32>
    %c0_1 = arith.constant 0 : index
    %c0_2 = arith.constant 0 : index
    %1 = vector.load %arg2[%c0_1, %c0_2] : memref<16x16xf32, #tpu.memory_space<vmem>>, vector<16x16xf32>
    %c0_3 = arith.constant 0 : index
    %c0_4 = arith.constant 0 : index
    %c0_5 = arith.constant 0 : index
    %2 = vector.load %arg7[%c0_3, %c0_4, %c0_5] : memref<2x8x128xf32, #tpu.memory_space<vmem>>, vector<1x8x128xf32>
    %3 = vector.shape_cast %2 : vector<1x8x128xf32> to vector<8x128xf32>
    %4 = vector.extract_strided_slice %3 {offsets = [0, 0], sizes = [1, 32], strides = [1, 1]} : vector<8x128xf32> to vector<1x32xf32>
    %5 = vector.extract_strided_slice %3 {offsets = [1, 0], sizes = [1, 32], strides = [1, 1]} : vector<8x128xf32> to vector<1x32xf32>
    %6 = vector.extract_strided_slice %3 {offsets = [2, 0], sizes = [1, 32], strides = [1, 1]} : vector<8x128xf32> to vector<1x32xf32>
    %7 = vector.extract_strided_slice %3 {offsets = [3, 0], sizes = [1, 32], strides = [1, 1]} : vector<8x128xf32> to vector<1x32xf32>
    %8 = vector.extract_strided_slice %3 {offsets = [4, 0], sizes = [1, 32], strides = [1, 1]} : vector<8x128xf32> to vector<1x32xf32>
    %9 = vector.extract_strided_slice %3 {offsets = [5, 0], sizes = [1, 32], strides = [1, 1]} : vector<8x128xf32> to vector<1x32xf32>
    %10 = vector.extract_strided_slice %3 {offsets = [6, 0], sizes = [1, 128], strides = [1, 1]} : vector<8x128xf32> to vector<1x128xf32>
    %cst = arith.constant dense<0.000000e+00> : vector<16xf32>
    %11 = vector.multi_reduction <add>, %0, %cst [1] : vector<16x32xf32> to vector<16xf32>
    %12 = vector.shape_cast %11 : vector<16xf32> to vector<16x1xf32>
    %cst_6 = arith.constant 3.200000e+01 : f32
    %13 = vector.broadcast %cst_6 : f32 to vector<16x1xf32>
    %14 = arith.divf %12, %13 : vector<16x1xf32>
    %15 = vector.broadcast %14 : vector<16x1xf32> to vector<16x32xf32>
    %16 = arith.subf %0, %15 : vector<16x32xf32>
    %17 = arith.mulf %16, %16 : vector<16x32xf32>
    %cst_7 = arith.constant dense<0.000000e+00> : vector<16xf32>
    %18 = vector.multi_reduction <add>, %17, %cst_7 [1] : vector<16x32xf32> to vector<16xf32>
    %19 = vector.shape_cast %18 : vector<16xf32> to vector<16x1xf32>
    %cst_8 = arith.constant 3.200000e+01 : f32
    %20 = vector.broadcast %cst_8 : f32 to vector<16x1xf32>
    %21 = arith.divf %19, %20 : vector<16x1xf32>
    %22 = vector.broadcast %14 : vector<16x1xf32> to vector<16x32xf32>
    %23 = arith.subf %0, %22 : vector<16x32xf32>
    %cst_9 = arith.constant 9.99999974E-6 : f32
    %24 = vector.broadcast %cst_9 : f32 to vector<16x1xf32>
    %25 = arith.addf %21, %24 : vector<16x1xf32>
    %26 = math.sqrt %25 : vector<16x1xf32>
    %27 = vector.broadcast %26 : vector<16x1xf32> to vector<16x32xf32>
    %28 = arith.divf %23, %27 : vector<16x32xf32>
    %29 = vector.broadcast %4 : vector<1x32xf32> to vector<16x32xf32>
    %30 = arith.mulf %28, %29 : vector<16x32xf32>
    %31 = vector.broadcast %5 : vector<1x32xf32> to vector<16x32xf32>
    %32 = arith.addf %30, %31 : vector<16x32xf32>
    %33 = arith.truncf %32 : vector<16x32xf32> to vector<16x32xbf16>
    %c0_10 = arith.constant 0 : index
    %c0_11 = arith.constant 0 : index
    %c0_12 = arith.constant 0 : index
    %34 = vector.load %arg3[%c0_10, %c0_11, %c0_12] : memref<2x32x96xbf16, #tpu.memory_space<vmem>>, vector<1x32x96xbf16>
    %35 = vector.shape_cast %34 : vector<1x32x96xbf16> to vector<32x96xbf16>
    %cst_13 = arith.constant dense<0.000000e+00> : vector<16x96xf32>
    %36 = tpu.matmul %33, %35, %cst_13 {dimension_numbers = #tpu.dot_dimension_numbers<[1], [0], [0], [1], [0, 0, 1, 1], [], []>} : vector<16x32xbf16>, vector<32x96xbf16>, vector<16x96xf32> -> vector<16x96xf32>
    %37 = arith.truncf %36 : vector<16x96xf32> to vector<16x96xbf16>
    %38 = vector.extract_strided_slice %37 {offsets = [0, 0], sizes = [16, 8], strides = [1, 1]} : vector<16x96xbf16> to vector<16x8xbf16>
    %39 = vector.extract_strided_slice %37 {offsets = [0, 32], sizes = [16, 8], strides = [1, 1]} : vector<16x96xbf16> to vector<16x8xbf16>
    "tpu.trace_start"() <{level = 10 : i32, message = "qd,kd->qk"}> : () -> ()
    %cst_14 = arith.constant dense<0.000000e+00> : vector<16x16xf32>
    %40 = tpu.matmul %38, %39, %cst_14 {dimension_numbers = #tpu.dot_dimension_numbers<[1], [1], [0], [0], [0, 0, 1, 0], [], []>} : vector<16x8xbf16>, vector<16x8xbf16>, vector<16x16xf32> -> vector<16x16xf32>
    "tpu.trace_stop"() : () -> ()
    %41 = vector.extract_strided_slice %37 {offsets = [0, 8], sizes = [16, 8], strides = [1, 1]} : vector<16x96xbf16> to vector<16x8xbf16>
    %42 = vector.extract_strided_slice %37 {offsets = [0, 40], sizes = [16, 8], strides = [1, 1]} : vector<16x96xbf16> to vector<16x8xbf16>
    "tpu.trace_start"() <{level = 10 : i32, message = "qd,kd->qk"}> : () -> ()
    %cst_15 = arith.constant dense<0.000000e+00> : vector<16x16xf32>
    %43 = tpu.matmul %41, %42, %cst_15 {dimension_numbers = #tpu.dot_dimension_numbers<[1], [1], [0], [0], [0, 0, 1, 0], [], []>} : vector<16x8xbf16>, vector<16x8xbf16>, vector<16x16xf32> -> vector<16x16xf32>
    "tpu.trace_stop"() : () -> ()
    %44 = vector.extract_strided_slice %37 {offsets = [0, 16], sizes = [16, 8], strides = [1, 1]} : vector<16x96xbf16> to vector<16x8xbf16>
    %45 = vector.extract_strided_slice %37 {offsets = [0, 48], sizes = [16, 8], strides = [1, 1]} : vector<16x96xbf16> to vector<16x8xbf16>
    "tpu.trace_start"() <{level = 10 : i32, message = "qd,kd->qk"}> : () -> ()
    %cst_16 = arith.constant dense<0.000000e+00> : vector<16x16xf32>
    %46 = tpu.matmul %44, %45, %cst_16 {dimension_numbers = #tpu.dot_dimension_numbers<[1], [1], [0], [0], [0, 0, 1, 0], [], []>} : vector<16x8xbf16>, vector<16x8xbf16>, vector<16x16xf32> -> vector<16x16xf32>
    "tpu.trace_stop"() : () -> ()
    %47 = vector.extract_strided_slice %37 {offsets = [0, 24], sizes = [16, 8], strides = [1, 1]} : vector<16x96xbf16> to vector<16x8xbf16>
    %48 = vector.extract_strided_slice %37 {offsets = [0, 56], sizes = [16, 8], strides = [1, 1]} : vector<16x96xbf16> to vector<16x8xbf16>
    "tpu.trace_start"() <{level = 10 : i32, message = "qd,kd->qk"}> : () -> ()
    %cst_17 = arith.constant dense<0.000000e+00> : vector<16x16xf32>
    %49 = tpu.matmul %47, %48, %cst_17 {dimension_numbers = #tpu.dot_dimension_numbers<[1], [1], [0], [0], [0, 0, 1, 0], [], []>} : vector<16x8xbf16>, vector<16x8xbf16>, vector<16x16xf32> -> vector<16x16xf32>
    "tpu.trace_stop"() : () -> ()
    %50 = vector.shape_cast %40 : vector<16x16xf32> to vector<1x16x16xf32>
    %51 = vector.shape_cast %43 : vector<16x16xf32> to vector<1x16x16xf32>
    %52 = vector.shape_cast %46 : vector<16x16xf32> to vector<1x16x16xf32>
    %53 = vector.shape_cast %49 : vector<16x16xf32> to vector<1x16x16xf32>
    %54 = tpu.concatenate %50, %51, %52, %53 in 0 : vector<1x16x16xf32>, vector<1x16x16xf32>, vector<1x16x16xf32>, vector<1x16x16xf32> -> vector<4x16x16xf32>
    %cst_18 = arith.constant 0.353553385 : f32
    %55 = vector.broadcast %cst_18 : f32 to vector<4x16x16xf32>
    %56 = arith.mulf %54, %55 : vector<4x16x16xf32>
    %57 = vector.shape_cast %1 : vector<16x16xf32> to vector<1x16x16xf32>
    %58 = vector.broadcast %57 : vector<1x16x16xf32> to vector<4x16x16xf32>
    %59 = arith.addf %56, %58 : vector<4x16x16xf32>
    %cst_19 = arith.constant dense<0xFF800000> : vector<4x16xf32>
    %60 = vector.multi_reduction <maximumf>, %59, %cst_19 [2] : vector<4x16x16xf32> to vector<4x16xf32>
    %61 = vector.shape_cast %60 : vector<4x16xf32> to vector<4x16x1xf32>
    %62 = vector.broadcast %61 : vector<4x16x1xf32> to vector<4x16x16xf32>
    %63 = arith.subf %59, %62 : vector<4x16x16xf32>
    %64 = math.exp %63 : vector<4x16x16xf32>
    %cst_20 = arith.constant dense<0.000000e+00> : vector<4x16xf32>
    %65 = vector.multi_reduction <add>, %64, %cst_20 [2] : vector<4x16x16xf32> to vector<4x16xf32>
    %66 = vector.shape_cast %65 : vector<4x16xf32> to vector<4x16x1xf32>
    %67 = tpu.reciprocal %66 {approx = true} : vector<4x16x1xf32> -> vector<4x16x1xf32>
    %68 = vector.broadcast %67 : vector<4x16x1xf32> to vector<4x16x16xf32>
    %69 = arith.mulf %64, %68 : vector<4x16x16xf32>
    %70 = arith.truncf %69 : vector<4x16x16xf32> to vector<4x16x16xbf16>
    %71 = vector.extract_strided_slice %70 {offsets = [0, 0, 0], sizes = [1, 16, 16], strides = [1, 1, 1]} : vector<4x16x16xbf16> to vector<1x16x16xbf16>
    %72 = vector.shape_cast %71 : vector<1x16x16xbf16> to vector<16x16xbf16>
    %73 = vector.extract_strided_slice %37 {offsets = [0, 64], sizes = [16, 8], strides = [1, 1]} : vector<16x96xbf16> to vector<16x8xbf16>
    %cst_21 = arith.constant dense<0.000000e+00> : vector<16x8xf32>
    %74 = tpu.matmul %72, %73, %cst_21 {dimension_numbers = #tpu.dot_dimension_numbers<[1], [0], [0], [1], [0, 0, 1, 1], [], []>} : vector<16x16xbf16>, vector<16x8xbf16>, vector<16x8xf32> -> vector<16x8xf32>
    %75 = vector.extract_strided_slice %70 {offsets = [1, 0, 0], sizes = [1, 16, 16], strides = [1, 1, 1]} : vector<4x16x16xbf16> to vector<1x16x16xbf16>
    %76 = vector.shape_cast %75 : vector<1x16x16xbf16> to vector<16x16xbf16>
    %77 = vector.extract_strided_slice %37 {offsets = [0, 72], sizes = [16, 8], strides = [1, 1]} : vector<16x96xbf16> to vector<16x8xbf16>
    %cst_22 = arith.constant dense<0.000000e+00> : vector<16x8xf32>
    %78 = tpu.matmul %76, %77, %cst_22 {dimension_numbers = #tpu.dot_dimension_numbers<[1], [0], [0], [1], [0, 0, 1, 1], [], []>} : vector<16x16xbf16>, vector<16x8xbf16>, vector<16x8xf32> -> vector<16x8xf32>
    %79 = vector.extract_strided_slice %70 {offsets = [2, 0, 0], sizes = [1, 16, 16], strides = [1, 1, 1]} : vector<4x16x16xbf16> to vector<1x16x16xbf16>
    %80 = vector.shape_cast %79 : vector<1x16x16xbf16> to vector<16x16xbf16>
    %81 = vector.extract_strided_slice %37 {offsets = [0, 80], sizes = [16, 8], strides = [1, 1]} : vector<16x96xbf16> to vector<16x8xbf16>
    %cst_23 = arith.constant dense<0.000000e+00> : vector<16x8xf32>
    %82 = tpu.matmul %80, %81, %cst_23 {dimension_numbers = #tpu.dot_dimension_numbers<[1], [0], [0], [1], [0, 0, 1, 1], [], []>} : vector<16x16xbf16>, vector<16x8xbf16>, vector<16x8xf32> -> vector<16x8xf32>
    %83 = vector.extract_strided_slice %70 {offsets = [3, 0, 0], sizes = [1, 16, 16], strides = [1, 1, 1]} : vector<4x16x16xbf16> to vector<1x16x16xbf16>
    %84 = vector.shape_cast %83 : vector<1x16x16xbf16> to vector<16x16xbf16>
    %85 = vector.extract_strided_slice %37 {offsets = [0, 88], sizes = [16, 8], strides = [1, 1]} : vector<16x96xbf16> to vector<16x8xbf16>
    %cst_24 = arith.constant dense<0.000000e+00> : vector<16x8xf32>
    %86 = tpu.matmul %84, %85, %cst_24 {dimension_numbers = #tpu.dot_dimension_numbers<[1], [0], [0], [1], [0, 0, 1, 1], [], []>} : vector<16x16xbf16>, vector<16x8xbf16>, vector<16x8xf32> -> vector<16x8xf32>
    %87 = tpu.concatenate %74, %78, %82, %86 in 1 : vector<16x8xf32>, vector<16x8xf32>, vector<16x8xf32>, vector<16x8xf32> -> vector<16x32xf32>
    %88 = arith.truncf %87 : vector<16x32xf32> to vector<16x32xbf16>
    %c0_25 = arith.constant 0 : index
    %c0_26 = arith.constant 0 : index
    %c0_27 = arith.constant 0 : index
    %89 = vector.load %arg4[%c0_25, %c0_26, %c0_27] : memref<2x32x32xbf16, #tpu.memory_space<vmem>>, vector<1x32x32xbf16>
    %90 = vector.shape_cast %89 : vector<1x32x32xbf16> to vector<32x32xbf16>
    %cst_28 = arith.constant dense<0.000000e+00> : vector<16x32xf32>
    %91 = tpu.matmul %88, %90, %cst_28 {dimension_numbers = #tpu.dot_dimension_numbers<[1], [0], [0], [1], [0, 0, 1, 1], [], []>} : vector<16x32xbf16>, vector<32x32xbf16>, vector<16x32xf32> -> vector<16x32xf32>
    %92 = arith.addf %0, %91 : vector<16x32xf32>
    %93 = vector.broadcast %8 : vector<1x32xf32> to vector<16x32xf32>
    %94 = arith.addf %92, %93 : vector<16x32xf32>
    %cst_29 = arith.constant dense<0.000000e+00> : vector<16xf32>
    %95 = vector.multi_reduction <add>, %94, %cst_29 [1] : vector<16x32xf32> to vector<16xf32>
    %96 = vector.shape_cast %95 : vector<16xf32> to vector<16x1xf32>
    %cst_30 = arith.constant 3.200000e+01 : f32
    %97 = vector.broadcast %cst_30 : f32 to vector<16x1xf32>
    %98 = arith.divf %96, %97 : vector<16x1xf32>
    %99 = vector.broadcast %98 : vector<16x1xf32> to vector<16x32xf32>
    %100 = arith.subf %94, %99 : vector<16x32xf32>
    %101 = arith.mulf %100, %100 : vector<16x32xf32>
    %cst_31 = arith.constant dense<0.000000e+00> : vector<16xf32>
    %102 = vector.multi_reduction <add>, %101, %cst_31 [1] : vector<16x32xf32> to vector<16xf32>
    %103 = vector.shape_cast %102 : vector<16xf32> to vector<16x1xf32>
    %cst_32 = arith.constant 3.200000e+01 : f32
    %104 = vector.broadcast %cst_32 : f32 to vector<16x1xf32>
    %105 = arith.divf %103, %104 : vector<16x1xf32>
    %106 = vector.broadcast %98 : vector<16x1xf32> to vector<16x32xf32>
    %107 = arith.subf %94, %106 : vector<16x32xf32>
    %cst_33 = arith.constant 9.99999974E-6 : f32
    %108 = vector.broadcast %cst_33 : f32 to vector<16x1xf32>
    %109 = arith.addf %105, %108 : vector<16x1xf32>
    %110 = math.sqrt %109 : vector<16x1xf32>
    %111 = vector.broadcast %110 : vector<16x1xf32> to vector<16x32xf32>
    %112 = arith.divf %107, %111 : vector<16x32xf32>
    %113 = vector.broadcast %6 : vector<1x32xf32> to vector<16x32xf32>
    %114 = arith.mulf %112, %113 : vector<16x32xf32>
    %115 = vector.broadcast %7 : vector<1x32xf32> to vector<16x32xf32>
    %116 = arith.addf %114, %115 : vector<16x32xf32>
    %117 = arith.truncf %116 : vector<16x32xf32> to vector<16x32xbf16>
    %c0_34 = arith.constant 0 : index
    %c0_35 = arith.constant 0 : index
    %c0_36 = arith.constant 0 : index
    %118 = vector.load %arg5[%c0_34, %c0_35, %c0_36] : memref<2x32x128xbf16, #tpu.memory_space<vmem>>, vector<1x32x128xbf16>
    %119 = vector.shape_cast %118 : vector<1x32x128xbf16> to vector<32x128xbf16>
    %cst_37 = arith.constant dense<0.000000e+00> : vector<16x128xf32>
    %120 = tpu.matmul %117, %119, %cst_37 {dimension_numbers = #tpu.dot_dimension_numbers<[1], [0], [0], [1], [0, 0, 1, 1], [], []>} : vector<16x32xbf16>, vector<32x128xbf16>, vector<16x128xf32> -> vector<16x128xf32>
    %121 = vector.broadcast %10 : vector<1x128xf32> to vector<16x128xf32>
    %122 = arith.addf %120, %121 : vector<16x128xf32>
    %cst_38 = arith.constant 5.000000e-01 : f32
    %123 = vector.broadcast %cst_38 : f32 to vector<16x128xf32>
    %124 = arith.mulf %123, %122 : vector<16x128xf32>
    %125 = arith.mulf %122, %122 : vector<16x128xf32>
    %126 = arith.mulf %122, %125 : vector<16x128xf32>
    %cst_39 = arith.constant 4.471500e-02 : f32
    %127 = vector.broadcast %cst_39 : f32 to vector<16x128xf32>
    %128 = arith.mulf %127, %126 : vector<16x128xf32>
    %129 = arith.addf %122, %128 : vector<16x128xf32>
    %cst_40 = arith.constant 0.797884583 : f32
    %130 = vector.broadcast %cst_40 : f32 to vector<16x128xf32>
    %131 = arith.mulf %130, %129 : vector<16x128xf32>
    %132 = math.tanh %131 : vector<16x128xf32>
    %cst_41 = arith.constant 1.000000e+00 : f32
    %133 = vector.broadcast %cst_41 : f32 to vector<16x128xf32>
    %134 = arith.addf %133, %132 : vector<16x128xf32>
    %135 = arith.mulf %124, %134 : vector<16x128xf32>
    %136 = arith.truncf %135 : vector<16x128xf32> to vector<16x128xbf16>
    %c0_42 = arith.constant 0 : index
    %c0_43 = arith.constant 0 : index
    %c0_44 = arith.constant 0 : index
    %137 = vector.load %arg6[%c0_42, %c0_43, %c0_44] : memref<2x128x32xbf16, #tpu.memory_space<vmem>>, vector<1x128x32xbf16>
    %138 = vector.shape_cast %137 : vector<1x128x32xbf16> to vector<128x32xbf16>
    %cst_45 = arith.constant dense<0.000000e+00> : vector<16x32xf32>
    %139 = tpu.matmul %136, %138, %cst_45 {dimension_numbers = #tpu.dot_dimension_numbers<[1], [0], [0], [1], [0, 0, 1, 1], [], []>} : vector<16x128xbf16>, vector<128x32xbf16>, vector<16x32xf32> -> vector<16x32xf32>
    %140 = arith.addf %94, %139 : vector<16x32xf32>
    %141 = vector.broadcast %9 : vector<1x32xf32> to vector<16x32xf32>
    %142 = arith.addf %140, %141 : vector<16x32xf32>
    %c1 = arith.constant 1 : index
    %c0_46 = arith.constant 0 : index
    %c0_47 = arith.constant 0 : index
    %143 = vector.load %arg7[%c1, %c0_46, %c0_47] : memref<2x8x128xf32, #tpu.memory_space<vmem>>, vector<1x8x128xf32>
    %144 = vector.shape_cast %143 : vector<1x8x128xf32> to vector<8x128xf32>
    %145 = vector.extract_strided_slice %144 {offsets = [0, 0], sizes = [1, 32], strides = [1, 1]} : vector<8x128xf32> to vector<1x32xf32>
    %146 = vector.extract_strided_slice %144 {offsets = [1, 0], sizes = [1, 32], strides = [1, 1]} : vector<8x128xf32> to vector<1x32xf32>
    %147 = vector.extract_strided_slice %144 {offsets = [2, 0], sizes = [1, 32], strides = [1, 1]} : vector<8x128xf32> to vector<1x32xf32>
    %148 = vector.extract_strided_slice %144 {offsets = [3, 0], sizes = [1, 32], strides = [1, 1]} : vector<8x128xf32> to vector<1x32xf32>
    %149 = vector.extract_strided_slice %144 {offsets = [4, 0], sizes = [1, 32], strides = [1, 1]} : vector<8x128xf32> to vector<1x32xf32>
    %150 = vector.extract_strided_slice %144 {offsets = [5, 0], sizes = [1, 32], strides = [1, 1]} : vector<8x128xf32> to vector<1x32xf32>
    %151 = vector.extract_strided_slice %144 {offsets = [6, 0], sizes = [1, 128], strides = [1, 1]} : vector<8x128xf32> to vector<1x128xf32>
    %cst_48 = arith.constant dense<0.000000e+00> : vector<16xf32>
    %152 = vector.multi_reduction <add>, %142, %cst_48 [1] : vector<16x32xf32> to vector<16xf32>
    %153 = vector.shape_cast %152 : vector<16xf32> to vector<16x1xf32>
    %cst_49 = arith.constant 3.200000e+01 : f32
    %154 = vector.broadcast %cst_49 : f32 to vector<16x1xf32>
    %155 = arith.divf %153, %154 : vector<16x1xf32>
    %156 = vector.broadcast %155 : vector<16x1xf32> to vector<16x32xf32>
    %157 = arith.subf %142, %156 : vector<16x32xf32>
    %158 = arith.mulf %157, %157 : vector<16x32xf32>
    %cst_50 = arith.constant dense<0.000000e+00> : vector<16xf32>
    %159 = vector.multi_reduction <add>, %158, %cst_50 [1] : vector<16x32xf32> to vector<16xf32>
    %160 = vector.shape_cast %159 : vector<16xf32> to vector<16x1xf32>
    %cst_51 = arith.constant 3.200000e+01 : f32
    %161 = vector.broadcast %cst_51 : f32 to vector<16x1xf32>
    %162 = arith.divf %160, %161 : vector<16x1xf32>
    %163 = vector.broadcast %155 : vector<16x1xf32> to vector<16x32xf32>
    %164 = arith.subf %142, %163 : vector<16x32xf32>
    %cst_52 = arith.constant 9.99999974E-6 : f32
    %165 = vector.broadcast %cst_52 : f32 to vector<16x1xf32>
    %166 = arith.addf %162, %165 : vector<16x1xf32>
    %167 = math.sqrt %166 : vector<16x1xf32>
    %168 = vector.broadcast %167 : vector<16x1xf32> to vector<16x32xf32>
    %169 = arith.divf %164, %168 : vector<16x32xf32>
    %170 = vector.broadcast %145 : vector<1x32xf32> to vector<16x32xf32>
    %171 = arith.mulf %169, %170 : vector<16x32xf32>
    %172 = vector.broadcast %146 : vector<1x32xf32> to vector<16x32xf32>
    %173 = arith.addf %171, %172 : vector<16x32xf32>
    %174 = arith.truncf %173 : vector<16x32xf32> to vector<16x32xbf16>
    %c1_53 = arith.constant 1 : index
    %c0_54 = arith.constant 0 : index
    %c0_55 = arith.constant 0 : index
    %175 = vector.load %arg3[%c1_53, %c0_54, %c0_55] : memref<2x32x96xbf16, #tpu.memory_space<vmem>>, vector<1x32x96xbf16>
    %176 = vector.shape_cast %175 : vector<1x32x96xbf16> to vector<32x96xbf16>
    %cst_56 = arith.constant dense<0.000000e+00> : vector<16x96xf32>
    %177 = tpu.matmul %174, %176, %cst_56 {dimension_numbers = #tpu.dot_dimension_numbers<[1], [0], [0], [1], [0, 0, 1, 1], [], []>} : vector<16x32xbf16>, vector<32x96xbf16>, vector<16x96xf32> -> vector<16x96xf32>
    %178 = arith.truncf %177 : vector<16x96xf32> to vector<16x96xbf16>
    %179 = vector.extract_strided_slice %178 {offsets = [0, 0], sizes = [16, 8], strides = [1, 1]} : vector<16x96xbf16> to vector<16x8xbf16>
    %180 = vector.extract_strided_slice %178 {offsets = [0, 32], sizes = [16, 8], strides = [1, 1]} : vector<16x96xbf16> to vector<16x8xbf16>
    "tpu.trace_start"() <{level = 10 : i32, message = "qd,kd->qk"}> : () -> ()
    %cst_57 = arith.constant dense<0.000000e+00> : vector<16x16xf32>
    %181 = tpu.matmul %179, %180, %cst_57 {dimension_numbers = #tpu.dot_dimension_numbers<[1], [1], [0], [0], [0, 0, 1, 0], [], []>} : vector<16x8xbf16>, vector<16x8xbf16>, vector<16x16xf32> -> vector<16x16xf32>
    "tpu.trace_stop"() : () -> ()
    %182 = vector.extract_strided_slice %178 {offsets = [0, 8], sizes = [16, 8], strides = [1, 1]} : vector<16x96xbf16> to vector<16x8xbf16>
    %183 = vector.extract_strided_slice %178 {offsets = [0, 40], sizes = [16, 8], strides = [1, 1]} : vector<16x96xbf16> to vector<16x8xbf16>
    "tpu.trace_start"() <{level = 10 : i32, message = "qd,kd->qk"}> : () -> ()
    %cst_58 = arith.constant dense<0.000000e+00> : vector<16x16xf32>
    %184 = tpu.matmul %182, %183, %cst_58 {dimension_numbers = #tpu.dot_dimension_numbers<[1], [1], [0], [0], [0, 0, 1, 0], [], []>} : vector<16x8xbf16>, vector<16x8xbf16>, vector<16x16xf32> -> vector<16x16xf32>
    "tpu.trace_stop"() : () -> ()
    %185 = vector.extract_strided_slice %178 {offsets = [0, 16], sizes = [16, 8], strides = [1, 1]} : vector<16x96xbf16> to vector<16x8xbf16>
    %186 = vector.extract_strided_slice %178 {offsets = [0, 48], sizes = [16, 8], strides = [1, 1]} : vector<16x96xbf16> to vector<16x8xbf16>
    "tpu.trace_start"() <{level = 10 : i32, message = "qd,kd->qk"}> : () -> ()
    %cst_59 = arith.constant dense<0.000000e+00> : vector<16x16xf32>
    %187 = tpu.matmul %185, %186, %cst_59 {dimension_numbers = #tpu.dot_dimension_numbers<[1], [1], [0], [0], [0, 0, 1, 0], [], []>} : vector<16x8xbf16>, vector<16x8xbf16>, vector<16x16xf32> -> vector<16x16xf32>
    "tpu.trace_stop"() : () -> ()
    %188 = vector.extract_strided_slice %178 {offsets = [0, 24], sizes = [16, 8], strides = [1, 1]} : vector<16x96xbf16> to vector<16x8xbf16>
    %189 = vector.extract_strided_slice %178 {offsets = [0, 56], sizes = [16, 8], strides = [1, 1]} : vector<16x96xbf16> to vector<16x8xbf16>
    "tpu.trace_start"() <{level = 10 : i32, message = "qd,kd->qk"}> : () -> ()
    %cst_60 = arith.constant dense<0.000000e+00> : vector<16x16xf32>
    %190 = tpu.matmul %188, %189, %cst_60 {dimension_numbers = #tpu.dot_dimension_numbers<[1], [1], [0], [0], [0, 0, 1, 0], [], []>} : vector<16x8xbf16>, vector<16x8xbf16>, vector<16x16xf32> -> vector<16x16xf32>
    "tpu.trace_stop"() : () -> ()
    %191 = vector.shape_cast %181 : vector<16x16xf32> to vector<1x16x16xf32>
    %192 = vector.shape_cast %184 : vector<16x16xf32> to vector<1x16x16xf32>
    %193 = vector.shape_cast %187 : vector<16x16xf32> to vector<1x16x16xf32>
    %194 = vector.shape_cast %190 : vector<16x16xf32> to vector<1x16x16xf32>
    %195 = tpu.concatenate %191, %192, %193, %194 in 0 : vector<1x16x16xf32>, vector<1x16x16xf32>, vector<1x16x16xf32>, vector<1x16x16xf32> -> vector<4x16x16xf32>
    %cst_61 = arith.constant 0.353553385 : f32
    %196 = vector.broadcast %cst_61 : f32 to vector<4x16x16xf32>
    %197 = arith.mulf %195, %196 : vector<4x16x16xf32>
    %198 = vector.shape_cast %1 : vector<16x16xf32> to vector<1x16x16xf32>
    %199 = vector.broadcast %198 : vector<1x16x16xf32> to vector<4x16x16xf32>
    %200 = arith.addf %197, %199 : vector<4x16x16xf32>
    %cst_62 = arith.constant dense<0xFF800000> : vector<4x16xf32>
    %201 = vector.multi_reduction <maximumf>, %200, %cst_62 [2] : vector<4x16x16xf32> to vector<4x16xf32>
    %202 = vector.shape_cast %201 : vector<4x16xf32> to vector<4x16x1xf32>
    %203 = vector.broadcast %202 : vector<4x16x1xf32> to vector<4x16x16xf32>
    %204 = arith.subf %200, %203 : vector<4x16x16xf32>
    %205 = math.exp %204 : vector<4x16x16xf32>
    %cst_63 = arith.constant dense<0.000000e+00> : vector<4x16xf32>
    %206 = vector.multi_reduction <add>, %205, %cst_63 [2] : vector<4x16x16xf32> to vector<4x16xf32>
    %207 = vector.shape_cast %206 : vector<4x16xf32> to vector<4x16x1xf32>
    %208 = tpu.reciprocal %207 {approx = true} : vector<4x16x1xf32> -> vector<4x16x1xf32>
    %209 = vector.broadcast %208 : vector<4x16x1xf32> to vector<4x16x16xf32>
    %210 = arith.mulf %205, %209 : vector<4x16x16xf32>
    %211 = arith.truncf %210 : vector<4x16x16xf32> to vector<4x16x16xbf16>
    %212 = vector.extract_strided_slice %211 {offsets = [0, 0, 0], sizes = [1, 16, 16], strides = [1, 1, 1]} : vector<4x16x16xbf16> to vector<1x16x16xbf16>
    %213 = vector.shape_cast %212 : vector<1x16x16xbf16> to vector<16x16xbf16>
    %214 = vector.extract_strided_slice %178 {offsets = [0, 64], sizes = [16, 8], strides = [1, 1]} : vector<16x96xbf16> to vector<16x8xbf16>
    %cst_64 = arith.constant dense<0.000000e+00> : vector<16x8xf32>
    %215 = tpu.matmul %213, %214, %cst_64 {dimension_numbers = #tpu.dot_dimension_numbers<[1], [0], [0], [1], [0, 0, 1, 1], [], []>} : vector<16x16xbf16>, vector<16x8xbf16>, vector<16x8xf32> -> vector<16x8xf32>
    %216 = vector.extract_strided_slice %211 {offsets = [1, 0, 0], sizes = [1, 16, 16], strides = [1, 1, 1]} : vector<4x16x16xbf16> to vector<1x16x16xbf16>
    %217 = vector.shape_cast %216 : vector<1x16x16xbf16> to vector<16x16xbf16>
    %218 = vector.extract_strided_slice %178 {offsets = [0, 72], sizes = [16, 8], strides = [1, 1]} : vector<16x96xbf16> to vector<16x8xbf16>
    %cst_65 = arith.constant dense<0.000000e+00> : vector<16x8xf32>
    %219 = tpu.matmul %217, %218, %cst_65 {dimension_numbers = #tpu.dot_dimension_numbers<[1], [0], [0], [1], [0, 0, 1, 1], [], []>} : vector<16x16xbf16>, vector<16x8xbf16>, vector<16x8xf32> -> vector<16x8xf32>
    %220 = vector.extract_strided_slice %211 {offsets = [2, 0, 0], sizes = [1, 16, 16], strides = [1, 1, 1]} : vector<4x16x16xbf16> to vector<1x16x16xbf16>
    %221 = vector.shape_cast %220 : vector<1x16x16xbf16> to vector<16x16xbf16>
    %222 = vector.extract_strided_slice %178 {offsets = [0, 80], sizes = [16, 8], strides = [1, 1]} : vector<16x96xbf16> to vector<16x8xbf16>
    %cst_66 = arith.constant dense<0.000000e+00> : vector<16x8xf32>
    %223 = tpu.matmul %221, %222, %cst_66 {dimension_numbers = #tpu.dot_dimension_numbers<[1], [0], [0], [1], [0, 0, 1, 1], [], []>} : vector<16x16xbf16>, vector<16x8xbf16>, vector<16x8xf32> -> vector<16x8xf32>
    %224 = vector.extract_strided_slice %211 {offsets = [3, 0, 0], sizes = [1, 16, 16], strides = [1, 1, 1]} : vector<4x16x16xbf16> to vector<1x16x16xbf16>
    %225 = vector.shape_cast %224 : vector<1x16x16xbf16> to vector<16x16xbf16>
    %226 = vector.extract_strided_slice %178 {offsets = [0, 88], sizes = [16, 8], strides = [1, 1]} : vector<16x96xbf16> to vector<16x8xbf16>
    %cst_67 = arith.constant dense<0.000000e+00> : vector<16x8xf32>
    %227 = tpu.matmul %225, %226, %cst_67 {dimension_numbers = #tpu.dot_dimension_numbers<[1], [0], [0], [1], [0, 0, 1, 1], [], []>} : vector<16x16xbf16>, vector<16x8xbf16>, vector<16x8xf32> -> vector<16x8xf32>
    %228 = tpu.concatenate %215, %219, %223, %227 in 1 : vector<16x8xf32>, vector<16x8xf32>, vector<16x8xf32>, vector<16x8xf32> -> vector<16x32xf32>
    %229 = arith.truncf %228 : vector<16x32xf32> to vector<16x32xbf16>
    %c1_68 = arith.constant 1 : index
    %c0_69 = arith.constant 0 : index
    %c0_70 = arith.constant 0 : index
    %230 = vector.load %arg4[%c1_68, %c0_69, %c0_70] : memref<2x32x32xbf16, #tpu.memory_space<vmem>>, vector<1x32x32xbf16>
    %231 = vector.shape_cast %230 : vector<1x32x32xbf16> to vector<32x32xbf16>
    %cst_71 = arith.constant dense<0.000000e+00> : vector<16x32xf32>
    %232 = tpu.matmul %229, %231, %cst_71 {dimension_numbers = #tpu.dot_dimension_numbers<[1], [0], [0], [1], [0, 0, 1, 1], [], []>} : vector<16x32xbf16>, vector<32x32xbf16>, vector<16x32xf32> -> vector<16x32xf32>
    %233 = arith.addf %142, %232 : vector<16x32xf32>
    %234 = vector.broadcast %149 : vector<1x32xf32> to vector<16x32xf32>
    %235 = arith.addf %233, %234 : vector<16x32xf32>
    %cst_72 = arith.constant dense<0.000000e+00> : vector<16xf32>
    %236 = vector.multi_reduction <add>, %235, %cst_72 [1] : vector<16x32xf32> to vector<16xf32>
    %237 = vector.shape_cast %236 : vector<16xf32> to vector<16x1xf32>
    %cst_73 = arith.constant 3.200000e+01 : f32
    %238 = vector.broadcast %cst_73 : f32 to vector<16x1xf32>
    %239 = arith.divf %237, %238 : vector<16x1xf32>
    %240 = vector.broadcast %239 : vector<16x1xf32> to vector<16x32xf32>
    %241 = arith.subf %235, %240 : vector<16x32xf32>
    %242 = arith.mulf %241, %241 : vector<16x32xf32>
    %cst_74 = arith.constant dense<0.000000e+00> : vector<16xf32>
    %243 = vector.multi_reduction <add>, %242, %cst_74 [1] : vector<16x32xf32> to vector<16xf32>
    %244 = vector.shape_cast %243 : vector<16xf32> to vector<16x1xf32>
    %cst_75 = arith.constant 3.200000e+01 : f32
    %245 = vector.broadcast %cst_75 : f32 to vector<16x1xf32>
    %246 = arith.divf %244, %245 : vector<16x1xf32>
    %247 = vector.broadcast %239 : vector<16x1xf32> to vector<16x32xf32>
    %248 = arith.subf %235, %247 : vector<16x32xf32>
    %cst_76 = arith.constant 9.99999974E-6 : f32
    %249 = vector.broadcast %cst_76 : f32 to vector<16x1xf32>
    %250 = arith.addf %246, %249 : vector<16x1xf32>
    %251 = math.sqrt %250 : vector<16x1xf32>
    %252 = vector.broadcast %251 : vector<16x1xf32> to vector<16x32xf32>
    %253 = arith.divf %248, %252 : vector<16x32xf32>
    %254 = vector.broadcast %147 : vector<1x32xf32> to vector<16x32xf32>
    %255 = arith.mulf %253, %254 : vector<16x32xf32>
    %256 = vector.broadcast %148 : vector<1x32xf32> to vector<16x32xf32>
    %257 = arith.addf %255, %256 : vector<16x32xf32>
    %258 = arith.truncf %257 : vector<16x32xf32> to vector<16x32xbf16>
    %c1_77 = arith.constant 1 : index
    %c0_78 = arith.constant 0 : index
    %c0_79 = arith.constant 0 : index
    %259 = vector.load %arg5[%c1_77, %c0_78, %c0_79] : memref<2x32x128xbf16, #tpu.memory_space<vmem>>, vector<1x32x128xbf16>
    %260 = vector.shape_cast %259 : vector<1x32x128xbf16> to vector<32x128xbf16>
    %cst_80 = arith.constant dense<0.000000e+00> : vector<16x128xf32>
    %261 = tpu.matmul %258, %260, %cst_80 {dimension_numbers = #tpu.dot_dimension_numbers<[1], [0], [0], [1], [0, 0, 1, 1], [], []>} : vector<16x32xbf16>, vector<32x128xbf16>, vector<16x128xf32> -> vector<16x128xf32>
    %262 = vector.broadcast %151 : vector<1x128xf32> to vector<16x128xf32>
    %263 = arith.addf %261, %262 : vector<16x128xf32>
    %cst_81 = arith.constant 5.000000e-01 : f32
    %264 = vector.broadcast %cst_81 : f32 to vector<16x128xf32>
    %265 = arith.mulf %264, %263 : vector<16x128xf32>
    %266 = arith.mulf %263, %263 : vector<16x128xf32>
    %267 = arith.mulf %263, %266 : vector<16x128xf32>
    %cst_82 = arith.constant 4.471500e-02 : f32
    %268 = vector.broadcast %cst_82 : f32 to vector<16x128xf32>
    %269 = arith.mulf %268, %267 : vector<16x128xf32>
    %270 = arith.addf %263, %269 : vector<16x128xf32>
    %cst_83 = arith.constant 0.797884583 : f32
    %271 = vector.broadcast %cst_83 : f32 to vector<16x128xf32>
    %272 = arith.mulf %271, %270 : vector<16x128xf32>
    %273 = math.tanh %272 : vector<16x128xf32>
    %cst_84 = arith.constant 1.000000e+00 : f32
    %274 = vector.broadcast %cst_84 : f32 to vector<16x128xf32>
    %275 = arith.addf %274, %273 : vector<16x128xf32>
    %276 = arith.mulf %265, %275 : vector<16x128xf32>
    %277 = arith.truncf %276 : vector<16x128xf32> to vector<16x128xbf16>
    %c1_85 = arith.constant 1 : index
    %c0_86 = arith.constant 0 : index
    %c0_87 = arith.constant 0 : index
    %278 = vector.load %arg6[%c1_85, %c0_86, %c0_87] : memref<2x128x32xbf16, #tpu.memory_space<vmem>>, vector<1x128x32xbf16>
    %279 = vector.shape_cast %278 : vector<1x128x32xbf16> to vector<128x32xbf16>
    %cst_88 = arith.constant dense<0.000000e+00> : vector<16x32xf32>
    %280 = tpu.matmul %277, %279, %cst_88 {dimension_numbers = #tpu.dot_dimension_numbers<[1], [0], [0], [1], [0, 0, 1, 1], [], []>} : vector<16x128xbf16>, vector<128x32xbf16>, vector<16x32xf32> -> vector<16x32xf32>
    %281 = arith.addf %235, %280 : vector<16x32xf32>
    %282 = vector.broadcast %150 : vector<1x32xf32> to vector<16x32xf32>
    %283 = arith.addf %281, %282 : vector<16x32xf32>
    %c0_89 = arith.constant 0 : index
    %c0_90 = arith.constant 0 : index
    %284 = vector.load %arg8[%c0_89, %c0_90] : memref<2x32xf32, #tpu.memory_space<vmem>>, vector<1x32xf32>
    %c1_91 = arith.constant 1 : index
    %c0_92 = arith.constant 0 : index
    %285 = vector.load %arg8[%c1_91, %c0_92] : memref<2x32xf32, #tpu.memory_space<vmem>>, vector<1x32xf32>
    %cst_93 = arith.constant dense<0.000000e+00> : vector<16xf32>
    %286 = vector.multi_reduction <add>, %283, %cst_93 [1] : vector<16x32xf32> to vector<16xf32>
    %287 = vector.shape_cast %286 : vector<16xf32> to vector<16x1xf32>
    %cst_94 = arith.constant 3.200000e+01 : f32
    %288 = vector.broadcast %cst_94 : f32 to vector<16x1xf32>
    %289 = arith.divf %287, %288 : vector<16x1xf32>
    %290 = vector.broadcast %289 : vector<16x1xf32> to vector<16x32xf32>
    %291 = arith.subf %283, %290 : vector<16x32xf32>
    %292 = arith.mulf %291, %291 : vector<16x32xf32>
    %cst_95 = arith.constant dense<0.000000e+00> : vector<16xf32>
    %293 = vector.multi_reduction <add>, %292, %cst_95 [1] : vector<16x32xf32> to vector<16xf32>
    %294 = vector.shape_cast %293 : vector<16xf32> to vector<16x1xf32>
    %cst_96 = arith.constant 3.200000e+01 : f32
    %295 = vector.broadcast %cst_96 : f32 to vector<16x1xf32>
    %296 = arith.divf %294, %295 : vector<16x1xf32>
    %297 = vector.broadcast %289 : vector<16x1xf32> to vector<16x32xf32>
    %298 = arith.subf %283, %297 : vector<16x32xf32>
    %cst_97 = arith.constant 9.99999974E-6 : f32
    %299 = vector.broadcast %cst_97 : f32 to vector<16x1xf32>
    %300 = arith.addf %296, %299 : vector<16x1xf32>
    %301 = math.sqrt %300 : vector<16x1xf32>
    %302 = vector.broadcast %301 : vector<16x1xf32> to vector<16x32xf32>
    %303 = arith.divf %298, %302 : vector<16x32xf32>
    %304 = vector.broadcast %284 : vector<1x32xf32> to vector<16x32xf32>
    %305 = arith.mulf %303, %304 : vector<16x32xf32>
    %306 = vector.broadcast %285 : vector<1x32xf32> to vector<16x32xf32>
    %307 = arith.addf %305, %306 : vector<16x32xf32>
    %308 = arith.truncf %307 : vector<16x32xf32> to vector<16x32xbf16>
    %c0_98 = arith.constant 0 : index
    %c0_99 = arith.constant 0 : index
    %309 = vector.load %arg9[%c0_98, %c0_99] : memref<32x128xbf16, #tpu.memory_space<vmem>>, vector<32x128xbf16>
    %cst_100 = arith.constant dense<0.000000e+00> : vector<16x128xf32>
    %310 = tpu.matmul %308, %309, %cst_100 {dimension_numbers = #tpu.dot_dimension_numbers<[1], [0], [0], [1], [0, 0, 1, 1], [], []>} : vector<16x32xbf16>, vector<32x128xbf16>, vector<16x128xf32> -> vector<16x128xf32>
    %c0_101 = arith.constant 0 : index
    %c0_102 = arith.constant 0 : index
    %311 = vector.load %arg10[%c0_101, %c0_102] : memref<16x128xf32, #tpu.memory_space<vmem>>, vector<16x128xf32>
    tpu.vector_store %arg10[%c0_101, %c0_102], %310 {strides = array<i32>} : memref<16x128xf32, #tpu.memory_space<vmem>>, vector<16x128xf32>,
    return
  }
  func.func @transform_0(%arg0: i32) -> (i32, i32) {
    %c0_i32 = arith.constant 0 : i32
    %c0_i32_0 = arith.constant 0 : i32
    %c0_i32_1 = arith.constant 0 : i32
    return %c0_i32, %c0_i32_0 : i32, i32
  }
  func.func @transform_1(%arg0: i32) -> (i32, i32) {
    %c0_i32 = arith.constant 0 : i32
    %c0_i32_0 = arith.constant 0 : i32
    %c0_i32_1 = arith.constant 0 : i32
    return %c0_i32, %c0_i32_0 : i32, i32
  }
  func.func @transform_2(%arg0: i32) -> (i32, i32, i32) {
    %c0_i32 = arith.constant 0 : i32
    %c0_i32_0 = arith.constant 0 : i32
    %c0_i32_1 = arith.constant 0 : i32
    %c0_i32_2 = arith.constant 0 : i32
    return %c0_i32, %c0_i32_0, %c0_i32_1 : i32, i32, i32
  }
  func.func @transform_3(%arg0: i32) -> (i32, i32, i32) {
    %c0_i32 = arith.constant 0 : i32
    %c0_i32_0 = arith.constant 0 : i32
    %c0_i32_1 = arith.constant 0 : i32
    %c0_i32_2 = arith.constant 0 : i32
    return %c0_i32, %c0_i32_0, %c0_i32_1 : i32, i32, i32
  }
  func.func @transform_4(%arg0: i32) -> (i32, i32, i32) {
    %c0_i32 = arith.constant 0 : i32
    %c0_i32_0 = arith.constant 0 : i32
    %c0_i32_1 = arith.constant 0 : i32
    %c0_i32_2 = arith.constant 0 : i32
    return %c0_i32, %c0_i32_0, %c0_i32_1 : i32, i32, i32
  }
  func.func @transform_5(%arg0: i32) -> (i32, i32, i32) {
    %c0_i32 = arith.constant 0 : i32
    %c0_i32_0 = arith.constant 0 : i32
    %c0_i32_1 = arith.constant 0 : i32
    %c0_i32_2 = arith.constant 0 : i32
    return %c0_i32, %c0_i32_0, %c0_i32_1 : i32, i32, i32
  }
  func.func @transform_6(%arg0: i32) -> (i32, i32, i32) {
    %c0_i32 = arith.constant 0 : i32
    %c0_i32_0 = arith.constant 0 : i32
    %c0_i32_1 = arith.constant 0 : i32
    %c0_i32_2 = arith.constant 0 : i32
    return %c0_i32, %c0_i32_0, %c0_i32_1 : i32, i32, i32
  }
  func.func @transform_7(%arg0: i32) -> (i32, i32) {
    %c0_i32 = arith.constant 0 : i32
    %c0_i32_0 = arith.constant 0 : i32
    %c0_i32_1 = arith.constant 0 : i32
    return %c0_i32, %c0_i32_0 : i32, i32
  }
  func.func @transform_8(%arg0: i32) -> (i32, i32) {
    %c0_i32 = arith.constant 0 : i32
    %c0_i32_0 = arith.constant 0 : i32
    %c0_i32_1 = arith.constant 0 : i32
    return %c0_i32, %c0_i32_0 : i32, i32
  }
  func.func @transform_9(%arg0: i32) -> (i32, i32) {
    %c0_i32 = arith.constant 0 : i32
    %c0_i32_0 = arith.constant 0 : i32
    %c0_i32_1 = arith.constant 0 : i32
    return %c0_i32, %c0_i32_0 : i32, i32
  }
}

</mosaic_0001>

<llo_original>
// kernel: tpu_custom_call.1
$region0: #{tpu_custom_call.1}
  #allocation0 [shape = 'u32[]', space=smem, size = 0x4, offset = 0x4, fixed_abs, tag = 'smem constant byte address 0x4 - core index']
  #allocation1 [shape = 'u32[72,128]{1,0:T(1,128)}', space=vmem, size = 0x9000, scoped, tag = 'internal scratch']
  %s0 = inlined_call_operand.vmem [shape: f32[16,32], index: 0, kind: input, shape index: {}]
  %s1 = inlined_call_operand.vmem [shape: f32[16,16], index: 1, kind: input, shape index: {}]
  %s2 = inlined_call_operand.vmem [shape: bf16[2,32,96], index: 2, kind: input, shape index: {}]
  %s3 = inlined_call_operand.vmem [shape: bf16[2,32,32], index: 3, kind: input, shape index: {}]
  %s4 = inlined_call_operand.vmem [shape: bf16[2,32,128], index: 4, kind: input, shape index: {}]
  %s5 = inlined_call_operand.vmem [shape: bf16[2,128,32], index: 5, kind: input, shape index: {}]
  %s6 = inlined_call_operand.vmem [shape: f32[2,8,128], index: 6, kind: input, shape index: {}]
  %s7 = inlined_call_operand.vmem [shape: f32[2,32], index: 7, kind: input, shape index: {}]
  %s8 = inlined_call_operand.vmem [shape: bf16[32,128], index: 8, kind: input, shape index: {}]
  %s9 = inlined_call_operand.hbm [shape: f32[16,128], index: 9, kind: output, shape index: {}]
  %s10 = sld [smem:[#allocation0]]
  $region46: #{tpu_custom_call.1} parent=0
    _
  %s12 = ssub.s32 1, %s10
  %s13 = scalar_select 0, %s12, %s10
  $region1: #{tpu_custom_call.1} parent=0
    #allocation2 [shape = 'u8[8192]{0}', space=vmem, size = 0x2000, scoped, tag = 'output window, operand 0, single buffered']
    #allocation3 [shape = 's32[1]{0}', space=sflag, size = 0x4, scoped, tag = 'scoped memory for tpu_custom_call.1']
    %14 = vsyncpa [#allocation3], 0
    // Predicated region
    $region2: #{tpu_custom_call.1} parent=1 // pred_check
      _
    $region3: #{tpu_custom_call.1} parent=1 // pred_check_branch
      %16 = sbr.rel (0) target = $region5
    $region4: #{tpu_custom_call.1} parent=1 // pred_region
      _
    $region5: #{tpu_custom_call.1} parent=1 // pred_fallthru
      _
    // Predicated region
    $region6: #{tpu_custom_call.1} parent=1 // pred_check
      _
    $region7: #{tpu_custom_call.1} parent=1 // pred_check_branch
      %18 = sbr.rel (0) target = $region9
    $region8: #{tpu_custom_call.1} parent=1 // pred_region
      _
    $region9: #{tpu_custom_call.1} parent=1 // pred_fallthru
      _
    // Predicated region
    $region10: #{tpu_custom_call.1} parent=1 // pred_check
      _
    $region11: #{tpu_custom_call.1} parent=1 // pred_check_branch
      %20 = sbr.rel (0) target = $region13
    $region12: #{tpu_custom_call.1} parent=1 // pred_region
      _
    $region13: #{tpu_custom_call.1} parent=1 // pred_fallthru
      _
    // Predicated region
    $region14: #{tpu_custom_call.1} parent=1 // pred_check
      _
    $region15: #{tpu_custom_call.1} parent=1 // pred_check_branch
      %22 = sbr.rel (0) target = $region17
    $region16: #{tpu_custom_call.1} parent=1 // pred_region
      _
    $region17: #{tpu_custom_call.1} parent=1 // pred_fallthru
      _
    // Predicated region
    $region18: #{tpu_custom_call.1} parent=1 // pred_check
      _
    $region19: #{tpu_custom_call.1} parent=1 // pred_check_branch
      %24 = sbr.rel (0) target = $region21
    $region20: #{tpu_custom_call.1} parent=1 // pred_region
      _
    $region21: #{tpu_custom_call.1} parent=1 // pred_fallthru
      _
    // Predicated region
    $region22: #{tpu_custom_call.1} parent=1 // pred_check
      _
    $region23: #{tpu_custom_call.1} parent=1 // pred_check_branch
      %26 = sbr.rel (0) target = $region25
    $region24: #{tpu_custom_call.1} parent=1 // pred_region
      _
    $region25: #{tpu_custom_call.1} parent=1 // pred_fallthru
      _
    // Predicated region
    $region26: #{tpu_custom_call.1} parent=1 // pred_check
      _
    $region27: #{tpu_custom_call.1} parent=1 // pred_check_branch
      %28 = sbr.rel (0) target = $region29
    $region28: #{tpu_custom_call.1} parent=1 // pred_region
      _
    $region29: #{tpu_custom_call.1} parent=1 // pred_fallthru
      _
    // Predicated region
    $region30: #{tpu_custom_call.1} parent=1 // pred_check
      _
    $region31: #{tpu_custom_call.1} parent=1 // pred_check_branch
      %30 = sbr.rel (0) target = $region33
    $region32: #{tpu_custom_call.1} parent=1 // pred_region
      _
    $region33: #{tpu_custom_call.1} parent=1 // pred_fallthru
      _
    // Predicated region
    $region34: #{tpu_custom_call.1} parent=1 // pred_check
      _
    $region35: #{tpu_custom_call.1} parent=1 // pred_check_branch
      %32 = sbr.rel (0) target = $region37
    $region36: #{tpu_custom_call.1} parent=1 // pred_region
      _
    $region37: #{tpu_custom_call.1} parent=1 // pred_fallthru
      _
    %v34 = vld [vmem:[%s0] sm:$0xff]
    %v35 = vld [vmem:[%s0 + $0x8] sm:$0xff]
    %v36 = vld [vmem:[%s1] sm:$0xff]
    %v37 = vld [vmem:[%s1 + $0x8] sm:$0xff]
    %v38 = vld [vmem:[%s6] sm:$0xff]
    %vm39 = vcmask 261120
    %v40 = vsel %vm39, %v34, 0.0
    %41 = vadd.xlane.f32.xlu0 %v40
    %v42 = vpop.xlane.xlu0 %41
    %v43 = vsel %vm39, %v35, 0.0
    %44 = vadd.xlane.f32.xlu0 %v43
    %v45 = vpop.xlane.xlu0 %44
    %v46 = vrcp.pop 32.0
    %v47 = vmul.f32 32.0, %v46
    %v48 = vsub.f32 1.0, %v47
    %v49 = vmul.f32 %v46, %v48
    %v50 = vadd.f32 %v46, %v49
    %vm51 = vweird.f32 %v46
    %v52 = vsel %vm51, %v46, %v50
    %v53 = vmul.f32 %v42, %v52
    %v54 = vmul.f32 %v45, %v52
    %v55 = vsub.f32 %v34, %v53
    %v56 = vsub.f32 %v35, %v54
    %v57 = vmul.f32 %v55, %v55
    %v58 = vmul.f32 %v56, %v56
    %v59 = vsel %vm39, %v57, 0.0
    %60 = vadd.xlane.f32.xlu0 %v59
    %v61 = vpop.xlane.xlu0 %60
    %v62 = vsel %vm39, %v58, 0.0
    %63 = vadd.xlane.f32.xlu0 %v62
    %v64 = vpop.xlane.xlu0 %63
    %v65 = vmul.f32 %v61, %v52
    %v66 = vmul.f32 %v64, %v52
    %v67 = vadd.f32 %v65, 1e-05
    %v68 = vadd.f32 %v66, 1e-05
    %v69 = vrsqrt.pop %v67
    %v70 = vmul.f32 %v69, %v67
    %v71 = vmul.f32 %v70, %v69
    %v72 = vmul.f32 0.5, %v71
    %v73 = vsub.f32 1.5, %v72
    %v74 = vmul.f32 %v69, %v73
    %v75 = vmul.f32 %v67, %v74
    %vm76 = vcmp.eq.f32.partialorder %v67, inf
    %v77 = vsel %vm76, %v67, %v75
    %vm78 = vcmp.eq.f32.partialorder %v67, 0.0
    %v79 = vand.u32 %v67, 2147483648
    %v80 = vsel %vm78, %v79, %v77
    %v81 = vrsqrt.pop %v68
    %v82 = vmul.f32 %v81, %v68
    %v83 = vmul.f32 %v82, %v81
    %v84 = vmul.f32 0.5, %v83
    %v85 = vsub.f32 1.5, %v84
    %v86 = vmul.f32 %v81, %v85
    %v87 = vmul.f32 %v68, %v86
    %vm88 = vcmp.eq.f32.partialorder %v68, inf
    %v89 = vsel %vm88, %v68, %v87
    %vm90 = vcmp.eq.f32.partialorder %v68, 0.0
    %v91 = vand.u32 %v68, 2147483648
    %v92 = vsel %vm90, %v91, %v89
    %v93 = vrcp.pop %v80
    %v94 = vmul.f32 %v80, %v93
    %v95 = vsub.f32 1.0, %v94
    %v96 = vmul.f32 %v93, %v95
    %v97 = vadd.f32 %v93, %v96
    %vm98 = vweird.f32 %v80
    %vm99 = vweird.f32 %v93
    %vm100 = vmor %vm98, %vm99
    %v101 = vsel %vm100, %v93, %v97
    %v102 = vand.u32 2147483647, %v80
    %vm103 = vcmp.eq.f32.partialorder %v102, 8.507059e+37
    %v104 = vand.u32 %v80, 2147483648
    %v105 = vor.u32 1.1754944e-38, %v104
    %v106 = vsel %vm103, %v105, %v101
    %v107 = vmul.f32 %v55, %v106
    %v108 = vrcp.pop %v92
    %v109 = vmul.f32 %v92, %v108
    %v110 = vsub.f32 1.0, %v109
    %v111 = vmul.f32 %v108, %v110
    %v112 = vadd.f32 %v108, %v111
    %vm113 = vweird.f32 %v92
    %vm114 = vweird.f32 %v108
    %vm115 = vmor %vm113, %vm114
    %v116 = vsel %vm115, %v108, %v112
    %v117 = vand.u32 2147483647, %v92
    %vm118 = vcmp.eq.f32.partialorder %v117, 8.507059e+37
    %v119 = vand.u32 %v92, 2147483648
    %v120 = vor.u32 1.1754944e-38, %v119
    %v121 = vsel %vm118, %v120, %v116
    %v122 = vmul.f32 %v56, %v121
    %v123 = vperm.slane %v38, 0
    %v124 = vmul.f32 %v107, %v123
    %v125 = vmul.f32 %v122, %v123
    %v126 = vperm.slane %v38, 1
    %v127 = vadd.f32 %v124, %v126
    %v128 = vadd.f32 %v125, %v126
    %v129 = vpack.c.bf16 %v128, %v127
    %v130 = vld [vmem:[%s2] sm:$0xf]
    %v131 = vld [vmem:[%s2 + $0x4] sm:$0xf]
    %v132 = vld [vmem:[%s2 + $0x8] sm:$0xf]
    %v133 = vld [vmem:[%s2 + $0xc] sm:$0xf]
    %v138 = vunpack.c.l.b16 %v130
    %v139 = vunpack.c.l.b16 %v131
    %v140 = vunpack.c.l.b16 %v132
    %v141 = vunpack.c.l.b16 %v133
    %v142 = vpack.c.b16 %v139, %v138
    %v143 = vpack.c.b16 %v141, %v140
    %v147 = vsel %vm39, %v129, 0
    %149 = vmatpush.bf16.msra.mxu0 0
    %150 = vmatpush.bf16.msra.mxu0 0
    %151 = vmatpush.bf16.msra.mxu0 0
    %152 = vmatpush.bf16.msra.mxu0 0
    %153 = vmatpush.bf16.msra.mxu0 0
    %154 = vmatpush.bf16.msra.mxu0 0
    %155 = vmatpush.bf16.msra.mxu0 %v143
    %156 = vmatpush.bf16.msra.mxu0 %v142
    %157 = vmatmul.bf16.gmra.mxu0 %v147
    %v158 = vpop.f32.mrf.mxu0
    %v159 = vadd.f32 0.0, %v158
    %v160 = vpop.f32.mrf.mxu0
    %v161 = vadd.f32 0.0, %v160
    %162 = vdwg.mxu0
    %v163 = vpack.c.bf16 %v159, %v159
    %v164 = vpack.c.bf16 %v161, %v161
    %v167 = vunpack.c.l.b16 %v163
    %v168 = vunpack.c.l.b16 %v164
    %v169 = vpack.c.b16 %v168, %v167
    %170 = vrot.lane.b32.xlu0 %v169, 96
    %v171 = vpop.permute.xlu0 %170
    %vm172 = vcmask 64512
    %v174 = vsel %vm172, %v169, 0
    %v177 = vsel %vm172, %v171, 0
    %179 = vmatpush.bf16.xpose.msra.mxu0 0
    %180 = vmatpush.bf16.xpose.msra.mxu0 0
    %181 = vmatpush.bf16.xpose.msra.mxu0 0
    %182 = vmatpush.bf16.xpose.msra.mxu0 0
    %183 = vmatpush.bf16.xpose.msra.mxu0 0
    %184 = vmatpush.bf16.xpose.msra.mxu0 0
    %185 = vmatpush.bf16.xpose.msra.mxu0 0
    %186 = vmatpush.bf16.xpose.msra.mxu0 %v177
    %187 = vmatmul.bf16.gmra.mxu0 %v174
    %v188 = vpop.f32.mrf.mxu0
    %v189 = vadd.f32 0.0, %v188
    %v190 = vpop.f32.mrf.mxu0
    %v191 = vadd.f32 0.0, %v190
    %192 = vdwg.mxu0
    %193 = vrot.lane.b32.xlu0 %v169, 120
    %v194 = vpop.permute.xlu0 %193
    %195 = vrot.lane.b32.xlu0 %v169, 88
    %v196 = vpop.permute.xlu0 %195
    %v198 = vsel %vm172, %v194, 0
    %v201 = vsel %vm172, %v196, 0
    %203 = vmatpush.bf16.xpose.msra.mxu0 0
    %204 = vmatpush.bf16.xpose.msra.mxu0 0
    %205 = vmatpush.bf16.xpose.msra.mxu0 0
    %206 = vmatpush.bf16.xpose.msra.mxu0 0
    %207 = vmatpush.bf16.xpose.msra.mxu0 0
    %208 = vmatpush.bf16.xpose.msra.mxu0 0
    %209 = vmatpush.bf16.xpose.msra.mxu0 0
    %210 = vmatpush.bf16.xpose.msra.mxu0 %v201
    %211 = vmatmul.bf16.gmra.mxu0 %v198
    %v212 = vpop.f32.mrf.mxu0
    %v213 = vadd.f32 0.0, %v212
    %v214 = vpop.f32.mrf.mxu0
    %v215 = vadd.f32 0.0, %v214
    %216 = vdwg.mxu0
    %217 = vrot.lane.b32.xlu0 %v169, 112
    %v218 = vpop.permute.xlu0 %217
    %219 = vrot.lane.b32.xlu0 %v169, 80
    %v220 = vpop.permute.xlu0 %219
    %v222 = vsel %vm172, %v218, 0
    %v225 = vsel %vm172, %v220, 0
    %227 = vmatpush.bf16.xpose.msra.mxu0 0
    %228 = vmatpush.bf16.xpose.msra.mxu0 0
    %229 = vmatpush.bf16.xpose.msra.mxu0 0
    %230 = vmatpush.bf16.xpose.msra.mxu0 0
    %231 = vmatpush.bf16.xpose.msra.mxu0 0
    %232 = vmatpush.bf16.xpose.msra.mxu0 0
    %233 = vmatpush.bf16.xpose.msra.mxu0 0
    %234 = vmatpush.bf16.xpose.msra.mxu0 %v225
    %235 = vmatmul.bf16.gmra.mxu0 %v222
    %v236 = vpop.f32.mrf.mxu0
    %v237 = vadd.f32 0.0, %v236
    %v238 = vpop.f32.mrf.mxu0
    %v239 = vadd.f32 0.0, %v238
    %240 = vdwg.mxu0
    %241 = vrot.lane.b32.xlu0 %v169, 104
    %v242 = vpop.permute.xlu0 %241
    %243 = vrot.lane.b32.xlu0 %v169, 72
    %v244 = vpop.permute.xlu0 %243
    %v246 = vsel %vm172, %v242, 0
    %v249 = vsel %vm172, %v244, 0
    %251 = vmatpush.bf16.xpose.msra.mxu0 0
    %252 = vmatpush.bf16.xpose.msra.mxu0 0
    %253 = vmatpush.bf16.xpose.msra.mxu0 0
    %254 = vmatpush.bf16.xpose.msra.mxu0 0
    %255 = vmatpush.bf16.xpose.msra.mxu0 0
    %256 = vmatpush.bf16.xpose.msra.mxu0 0
    %257 = vmatpush.bf16.xpose.msra.mxu0 0
    %258 = vmatpush.bf16.xpose.msra.mxu0 %v249
    %259 = vmatmul.bf16.gmra.mxu0 %v246
    %v260 = vpop.f32.mrf.mxu0
    %v261 = vadd.f32 0.0, %v260
    %v262 = vpop.f32.mrf.mxu0
    %v263 = vadd.f32 0.0, %v262
    %264 = vdwg.mxu0
    %v265 = vmul.f32 %v189, 0.35355338
    %v266 = vmul.f32 %v191, 0.35355338
    %v267 = vmul.f32 %v213, 0.35355338
    %v268 = vmul.f32 %v215, 0.35355338
    %v269 = vmul.f32 %v237, 0.35355338
    %v270 = vmul.f32 %v239, 0.35355338
    %v271 = vmul.f32 %v261, 0.35355338
    %v272 = vmul.f32 %v263, 0.35355338
    %v273 = vadd.f32 %v265, %v36
    %v274 = vadd.f32 %v266, %v37
    %v275 = vadd.f32 %v267, %v36
    %v276 = vadd.f32 %v268, %v37
    %v277 = vadd.f32 %v269, %v36
    %v278 = vadd.f32 %v270, %v37
    %v279 = vadd.f32 %v271, %v36
    %v280 = vadd.f32 %v272, %v37
    %vm281 = vcmask 130048
    %v282 = vsel %vm281, %v273, -inf
    %283 = vmax.xlane.f32.xlu0 %v282
    %v284 = vpop.xlane.xlu0 %283
    %v285 = vsel %vm281, %v274, -inf
    %286 = vmax.xlane.f32.xlu0 %v285
    %v287 = vpop.xlane.xlu0 %286
    %v288 = vsel %vm281, %v275, -inf
    %289 = vmax.xlane.f32.xlu0 %v288
    %v290 = vpop.xlane.xlu0 %289
    %v291 = vsel %vm281, %v276, -inf
    %292 = vmax.xlane.f32.xlu0 %v291
    %v293 = vpop.xlane.xlu0 %292
    %v294 = vsel %vm281, %v277, -inf
    %295 = vmax.xlane.f32.xlu0 %v294
    %v296 = vpop.xlane.xlu0 %295
    %v297 = vsel %vm281, %v278, -inf
    %298 = vmax.xlane.f32.xlu0 %v297
    %v299 = vpop.xlane.xlu0 %298
    %v300 = vsel %vm281, %v279, -inf
    %301 = vmax.xlane.f32.xlu0 %v300
    %v302 = vpop.xlane.xlu0 %301
    %v303 = vsel %vm281, %v280, -inf
    %304 = vmax.xlane.f32.xlu0 %v303
    %v305 = vpop.xlane.xlu0 %304
    %v306 = vsub.f32 %v273, %v284
    %v307 = vsub.f32 %v274, %v287
    %v308 = vsub.f32 %v275, %v290
    %v309 = vsub.f32 %v276, %v293
    %v310 = vsub.f32 %v277, %v296
    %v311 = vsub.f32 %v278, %v299
    %v312 = vsub.f32 %v279, %v302
    %v313 = vsub.f32 %v280, %v305
    %v314 = vmul.f32 %v306, 1.442695
    %v315 = vpow.pop %v314
    %v316 = vmul.f32 %v307, 1.442695
    %v317 = vpow.pop %v316
    %v318 = vmul.f32 %v308, 1.442695
    %v319 = vpow.pop %v318
    %v320 = vmul.f32 %v309, 1.442695
    %v321 = vpow.pop %v320
    %v322 = vmul.f32 %v310, 1.442695
    %v323 = vpow.pop %v322
    %v324 = vmul.f32 %v311, 1.442695
    %v325 = vpow.pop %v324
    %v326 = vmul.f32 %v312, 1.442695
    %v327 = vpow.pop %v326
    %v328 = vmul.f32 %v313, 1.442695
    %v329 = vpow.pop %v328
    %v330 = vsel %vm281, %v315, 0.0
    %331 = vadd.xlane.f32.xlu0 %v330
    %v332 = vpop.xlane.xlu0 %331
    %v333 = vsel %vm281, %v317, 0.0
    %334 = vadd.xlane.f32.xlu0 %v333
    %v335 = vpop.xlane.xlu0 %334
    %v336 = vsel %vm281, %v319, 0.0
    %337 = vadd.xlane.f32.xlu0 %v336
    %v338 = vpop.xlane.xlu0 %337
    %v339 = vsel %vm281, %v321, 0.0
    %340 = vadd.xlane.f32.xlu0 %v339
    %v341 = vpop.xlane.xlu0 %340
    %v342 = vsel %vm281, %v323, 0.0
    %343 = vadd.xlane.f32.xlu0 %v342
    %v344 = vpop.xlane.xlu0 %343
    %v345 = vsel %vm281, %v325, 0.0
    %346 = vadd.xlane.f32.xlu0 %v345
    %v347 = vpop.xlane.xlu0 %346
    %v348 = vsel %vm281, %v327, 0.0
    %349 = vadd.xlane.f32.xlu0 %v348
    %v350 = vpop.xlane.xlu0 %349
    %v351 = vsel %vm281, %v329, 0.0
    %352 = vadd.xlane.f32.xlu0 %v351
    %v353 = vpop.xlane.xlu0 %352
    %v354 = vrcp.pop %v332
    %v355 = vrcp.pop %v335
    %v356 = vrcp.pop %v338
    %v357 = vrcp.pop %v341
    %v358 = vrcp.pop %v344
    %v359 = vrcp.pop %v347
    %v360 = vrcp.pop %v350
    %v361 = vrcp.pop %v353
    %v362 = vmul.f32 %v315, %v354
    %v363 = vmul.f32 %v317, %v355
    %v364 = vmul.f32 %v319, %v356
    %v365 = vmul.f32 %v321, %v357
    %v366 = vmul.f32 %v323, %v358
    %v367 = vmul.f32 %v325, %v359
    %v368 = vmul.f32 %v327, %v360
    %v369 = vmul.f32 %v329, %v361
    %v370 = vpack.c.bf16 %v362, %v362
    %v371 = vpack.c.bf16 %v363, %v363
    %v372 = vpack.c.bf16 %v364, %v364
    %v373 = vpack.c.bf16 %v365, %v365
    %v374 = vpack.c.bf16 %v366, %v366
    %v375 = vpack.c.bf16 %v367, %v367
    %v376 = vpack.c.bf16 %v368, %v368
    %v377 = vpack.c.bf16 %v369, %v369
    %v380 = vunpack.c.l.b16 %v370
    %v381 = vunpack.c.l.b16 %v371
    %v382 = vpack.c.b16 %v381, %v380
    %383 = vrot.lane.b32.xlu0 %v169, 64
    %v384 = vpop.permute.xlu0 %383
    %v387 = vsel %vm281, %v382, 0
    %389 = vmatpush.bf16.msra.mxu0 0
    %390 = vmatpush.bf16.msra.mxu0 0
    %391 = vmatpush.bf16.msra.mxu0 0
    %392 = vmatpush.bf16.msra.mxu0 0
    %393 = vmatpush.bf16.msra.mxu0 0
    %394 = vmatpush.bf16.msra.mxu0 0
    %395 = vmatpush.bf16.msra.mxu0 0
    %396 = vmatpush.bf16.msra.mxu0 %v384
    %397 = vmatmul.bf16.gmra.mxu0 %v387
    %v398 = vpop.f32.mrf.mxu0
    %v399 = vadd.f32 0.0, %v398
    %v400 = vpop.f32.mrf.mxu0
    %v401 = vadd.f32 0.0, %v400
    %402 = vdwg.mxu0
    %v405 = vunpack.c.l.b16 %v372
    %v406 = vunpack.c.l.b16 %v373
    %v407 = vpack.c.b16 %v406, %v405
    %408 = vrot.lane.b32.xlu0 %v169, 56
    %v409 = vpop.permute.xlu0 %408
    %v412 = vsel %vm281, %v407, 0
    %414 = vmatpush.bf16.msra.mxu0 0
    %415 = vmatpush.bf16.msra.mxu0 0
    %416 = vmatpush.bf16.msra.mxu0 0
    %417 = vmatpush.bf16.msra.mxu0 0
    %418 = vmatpush.bf16.msra.mxu0 0
    %419 = vmatpush.bf16.msra.mxu0 0
    %420 = vmatpush.bf16.msra.mxu0 0
    %421 = vmatpush.bf16.msra.mxu0 %v409
    %422 = vmatmul.bf16.gmra.mxu0 %v412
    %v423 = vpop.f32.mrf.mxu0
    %v424 = vadd.f32 0.0, %v423
    %v425 = vpop.f32.mrf.mxu0
    %v426 = vadd.f32 0.0, %v425
    %427 = vdwg.mxu0
    %v430 = vunpack.c.l.b16 %v374
    %v431 = vunpack.c.l.b16 %v375
    %v432 = vpack.c.b16 %v431, %v430
    %433 = vrot.lane.b32.xlu0 %v169, 48
    %v434 = vpop.permute.xlu0 %433
    %v437 = vsel %vm281, %v432, 0
    %439 = vmatpush.bf16.msra.mxu0 0
    %440 = vmatpush.bf16.msra.mxu0 0
    %441 = vmatpush.bf16.msra.mxu0 0
    %442 = vmatpush.bf16.msra.mxu0 0
    %443 = vmatpush.bf16.msra.mxu0 0
    %444 = vmatpush.bf16.msra.mxu0 0
    %445 = vmatpush.bf16.msra.mxu0 0
    %446 = vmatpush.bf16.msra.mxu0 %v434
    %447 = vmatmul.bf16.gmra.mxu0 %v437
    %v448 = vpop.f32.mrf.mxu0
    %v449 = vadd.f32 0.0, %v448
    %v450 = vpop.f32.mrf.mxu0
    %v451 = vadd.f32 0.0, %v450
    %452 = vdwg.mxu0
    %v455 = vunpack.c.l.b16 %v376
    %v456 = vunpack.c.l.b16 %v377
    %v457 = vpack.c.b16 %v456, %v455
    %458 = vrot.lane.b32.xlu0 %v169, 40
    %v459 = vpop.permute.xlu0 %458
    %v462 = vsel %vm281, %v457, 0
    %464 = vmatpush.bf16.msra.mxu0 0
    %465 = vmatpush.bf16.msra.mxu0 0
    %466 = vmatpush.bf16.msra.mxu0 0
    %467 = vmatpush.bf16.msra.mxu0 0
    %468 = vmatpush.bf16.msra.mxu0 0
    %469 = vmatpush.bf16.msra.mxu0 0
    %470 = vmatpush.bf16.msra.mxu0 0
    %471 = vmatpush.bf16.msra.mxu0 %v459
    %472 = vmatmul.bf16.gmra.mxu0 %v462
    %v473 = vpop.f32.mrf.mxu0
    %v474 = vadd.f32 0.0, %v473
    %v475 = vpop.f32.mrf.mxu0
    %v476 = vadd.f32 0.0, %v475
    %477 = vdwg.mxu0
    %480 = vrot.lane.b32.xlu0 %v424, 8
    %v481 = vpop.permute.xlu0 %480
    %482 = vrot.lane.b32.xlu0 %v426, 8
    %v483 = vpop.permute.xlu0 %482
    %488 = vrot.lane.b32.xlu0 %v449, 16
    %v489 = vpop.permute.xlu0 %488
    %490 = vrot.lane.b32.xlu0 %v451, 16
    %v491 = vpop.permute.xlu0 %490
    %496 = vrot.lane.b32.xlu0 %v474, 24
    %v497 = vpop.permute.xlu0 %496
    %498 = vrot.lane.b32.xlu0 %v476, 24
    %v499 = vpop.permute.xlu0 %498
    %v502 = vsel %vm172, %v399, %v481
    %v503 = vsel %vm172, %v401, %v483
    %v504 = vsel %vm281, %v502, %v489
    %v505 = vsel %vm281, %v503, %v491
    %vm506 = vcmask 195584
    %v507 = vsel %vm506, %v504, %v497
    %v508 = vsel %vm506, %v505, %v499
    %v509 = vpack.c.bf16 %v508, %v507
    %v510 = vld [vmem:[%s3] sm:$0xf]
    %v511 = vld [vmem:[%s3 + $0x4] sm:$0xf]
    %v512 = vld [vmem:[%s3 + $0x8] sm:$0xf]
    %v513 = vld [vmem:[%s3 + $0xc] sm:$0xf]
    %v518 = vunpack.c.l.b16 %v510
    %v519 = vunpack.c.l.b16 %v511
    %v520 = vunpack.c.l.b16 %v512
    %v521 = vunpack.c.l.b16 %v513
    %v522 = vpack.c.b16 %v519, %v518
    %v523 = vpack.c.b16 %v521, %v520
    %v527 = vsel %vm39, %v509, 0
    %529 = vmatpush.bf16.msra.mxu0 0
    %530 = vmatpush.bf16.msra.mxu0 0
    %531 = vmatpush.bf16.msra.mxu0 0
    %532 = vmatpush.bf16.msra.mxu0 0
    %533 = vmatpush.bf16.msra.mxu0 0
    %534 = vmatpush.bf16.msra.mxu0 0
    %535 = vmatpush.bf16.msra.mxu0 %v523
    %536 = vmatpush.bf16.msra.mxu0 %v522
    %537 = vmatmul.bf16.gmra.mxu0 %v527
    %v538 = vpop.f32.mrf.mxu0
    %v539 = vadd.f32 0.0, %v538
    %v540 = vpop.f32.mrf.mxu0
    %v541 = vadd.f32 0.0, %v540
    %542 = vdwg.mxu0
    %v543 = vadd.f32 %v34, %v539
    %v544 = vadd.f32 %v35, %v541
    %v545 = vperm.slane %v38, 4
    %v546 = vadd.f32 %v543, %v545
    %v547 = vadd.f32 %v544, %v545
    %v548 = vsel %vm39, %v546, 0.0
    %549 = vadd.xlane.f32.xlu0 %v548
    %v550 = vpop.xlane.xlu0 %549
    %v551 = vsel %vm39, %v547, 0.0
    %552 = vadd.xlane.f32.xlu0 %v551
    %v553 = vpop.xlane.xlu0 %552
    %v554 = vmul.f32 %v550, %v52
    %v555 = vmul.f32 %v553, %v52
    %v556 = vsub.f32 %v546, %v554
    %v557 = vsub.f32 %v547, %v555
    %v558 = vmul.f32 %v556, %v556
    %v559 = vmul.f32 %v557, %v557
    %v560 = vsel %vm39, %v558, 0.0
    %561 = vadd.xlane.f32.xlu0 %v560
    %v562 = vpop.xlane.xlu0 %561
    %v563 = vsel %vm39, %v559, 0.0
    %564 = vadd.xlane.f32.xlu0 %v563
    %v565 = vpop.xlane.xlu0 %564
    %v566 = vmul.f32 %v562, %v52
    %v567 = vmul.f32 %v565, %v52
    %v568 = vadd.f32 %v566, 1e-05
    %v569 = vadd.f32 %v567, 1e-05
    %v570 = vrsqrt.pop %v568
    %v571 = vmul.f32 %v570, %v568
    %v572 = vmul.f32 %v571, %v570
    %v573 = vmul.f32 0.5, %v572
    %v574 = vsub.f32 1.5, %v573
    %v575 = vmul.f32 %v570, %v574
    %v576 = vmul.f32 %v568, %v575
    %vm577 = vcmp.eq.f32.partialorder %v568, inf
    %v578 = vsel %vm577, %v568, %v576
    %vm579 = vcmp.eq.f32.partialorder %v568, 0.0
    %v580 = vand.u32 %v568, 2147483648
    %v581 = vsel %vm579, %v580, %v578
    %v582 = vrsqrt.pop %v569
    %v583 = vmul.f32 %v582, %v569
    %v584 = vmul.f32 %v583, %v582
    %v585 = vmul.f32 0.5, %v584
    %v586 = vsub.f32 1.5, %v585
    %v587 = vmul.f32 %v582, %v586
    %v588 = vmul.f32 %v569, %v587
    %vm589 = vcmp.eq.f32.partialorder %v569, inf
    %v590 = vsel %vm589, %v569, %v588
    %vm591 = vcmp.eq.f32.partialorder %v569, 0.0
    %v592 = vand.u32 %v569, 2147483648
    %v593 = vsel %vm591, %v592, %v590
    %v594 = vrcp.pop %v581
    %v595 = vmul.f32 %v581, %v594
    %v596 = vsub.f32 1.0, %v595
    %v597 = vmul.f32 %v594, %v596
    %v598 = vadd.f32 %v594, %v597
    %vm599 = vweird.f32 %v581
    %vm600 = vweird.f32 %v594
    %vm601 = vmor %vm599, %vm600
    %v602 = vsel %vm601, %v594, %v598
    %v603 = vand.u32 2147483647, %v581
    %vm604 = vcmp.eq.f32.partialorder %v603, 8.507059e+37
    %v605 = vand.u32 %v581, 2147483648
    %v606 = vor.u32 1.1754944e-38, %v605
    %v607 = vsel %vm604, %v606, %v602
    %v608 = vmul.f32 %v556, %v607
    %v609 = vrcp.pop %v593
    %v610 = vmul.f32 %v593, %v609
    %v611 = vsub.f32 1.0, %v610
    %v612 = vmul.f32 %v609, %v611
    %v613 = vadd.f32 %v609, %v612
    %vm614 = vweird.f32 %v593
    %vm615 = vweird.f32 %v609
    %vm616 = vmor %vm614, %vm615
    %v617 = vsel %vm616, %v609, %v613
    %v618 = vand.u32 2147483647, %v593
    %vm619 = vcmp.eq.f32.partialorder %v618, 8.507059e+37
    %v620 = vand.u32 %v593, 2147483648
    %v621 = vor.u32 1.1754944e-38, %v620
    %v622 = vsel %vm619, %v621, %v617
    %v623 = vmul.f32 %v557, %v622
    %v624 = vperm.slane %v38, 2
    %v625 = vmul.f32 %v608, %v624
    %v626 = vmul.f32 %v623, %v624
    %v627 = vperm.slane %v38, 3
    %v628 = vadd.f32 %v625, %v627
    %v629 = vadd.f32 %v626, %v627
    %v630 = vpack.c.bf16 %v629, %v628
    %v631 = vld [vmem:[%s4] sm:$0xf]
    %v632 = vld [vmem:[%s4 + $0x4] sm:$0xf]
    %v633 = vld [vmem:[%s4 + $0x8] sm:$0xf]
    %v634 = vld [vmem:[%s4 + $0xc] sm:$0xf]
    %v635 = vperm.slane %v38, 6
    %v640 = vunpack.c.l.b16 %v631
    %v641 = vunpack.c.l.b16 %v632
    %v642 = vunpack.c.l.b16 %v633
    %v643 = vunpack.c.l.b16 %v634
    %v644 = vpack.c.b16 %v641, %v640
    %v645 = vpack.c.b16 %v643, %v642
    %v649 = vsel %vm39, %v630, 0
    %651 = vmatpush.bf16.msra.mxu0 0
    %652 = vmatpush.bf16.msra.mxu0 0
    %653 = vmatpush.bf16.msra.mxu0 0
    %654 = vmatpush.bf16.msra.mxu0 0
    %655 = vmatpush.bf16.msra.mxu0 0
    %656 = vmatpush.bf16.msra.mxu0 0
    %657 = vmatpush.bf16.msra.mxu0 %v645
    %658 = vmatpush.bf16.msra.mxu0 %v644
    %659 = vmatmul.bf16.gmra.mxu0 %v649
    %v660 = vpop.f32.mrf.mxu0
    %v661 = vadd.f32 %v635, %v660
    %v662 = vpop.f32.mrf.mxu0
    %v663 = vadd.f32 %v635, %v662
    %664 = vdwg.mxu0
    %v665 = vmul.f32 %v661, 0.5
    %v666 = vmul.f32 %v663, 0.5
    %v667 = vmul.f32 %v661, %v661
    %v668 = vmul.f32 %v663, %v663
    %v669 = vmul.f32 %v661, %v667
    %v670 = vmul.f32 %v663, %v668
    %v671 = vmul.f32 %v669, 0.044715
    %v672 = vmul.f32 %v670, 0.044715
    %v673 = vadd.f32 %v661, %v671
    %v674 = vadd.f32 %v663, %v672
    %v675 = vmul.f32 %v673, 0.7978846
    %v676 = vmul.f32 %v674, 0.7978846
    %v677 = vtanh.pop %v675
    %v678 = vtanh.pop %v676
    %v679 = vadd.f32 %v677, 1.0
    %v680 = vadd.f32 %v678, 1.0
    %v681 = vmul.f32 %v665, %v679
    %v682 = vmul.f32 %v666, %v680
    %v683 = vpack.c.bf16 %v682, %v681
    %v684 = vld [vmem:[%s5] sm:$0xf]
    %v685 = vld [vmem:[%s5 + $0x4] sm:$0xf]
    %v686 = vld [vmem:[%s5 + $0x8] sm:$0xf]
    %v687 = vld [vmem:[%s5 + $0xc] sm:$0xf]
    %v688 = vld [vmem:[%s5 + $0x10] sm:$0xf]
    %v689 = vld [vmem:[%s5 + $0x14] sm:$0xf]
    %v690 = vld [vmem:[%s5 + $0x18] sm:$0xf]
    %v691 = vld [vmem:[%s5 + $0x1c] sm:$0xf]
    %v692 = vld [vmem:[%s5 + $0x20] sm:$0xf]
    %v693 = vld [vmem:[%s5 + $0x24] sm:$0xf]
    %v694 = vld [vmem:[%s5 + $0x28] sm:$0xf]
    %v695 = vld [vmem:[%s5 + $0x2c] sm:$0xf]
    %v696 = vld [vmem:[%s5 + $0x30] sm:$0xf]
    %v697 = vld [vmem:[%s5 + $0x34] sm:$0xf]
    %v698 = vld [vmem:[%s5 + $0x38] sm:$0xf]
    %v699 = vld [vmem:[%s5 + $0x3c] sm:$0xf]
    %v716 = vunpack.c.l.b16 %v684
    %v717 = vunpack.c.l.b16 %v685
    %v718 = vunpack.c.l.b16 %v686
    %v719 = vunpack.c.l.b16 %v687
    %v720 = vunpack.c.l.b16 %v688
    %v721 = vunpack.c.l.b16 %v689
    %v722 = vunpack.c.l.b16 %v690
    %v723 = vunpack.c.l.b16 %v691
    %v724 = vunpack.c.l.b16 %v692
    %v725 = vunpack.c.l.b16 %v693
    %v726 = vunpack.c.l.b16 %v694
    %v727 = vunpack.c.l.b16 %v695
    %v728 = vunpack.c.l.b16 %v696
    %v729 = vunpack.c.l.b16 %v697
    %v730 = vunpack.c.l.b16 %v698
    %v731 = vunpack.c.l.b16 %v699
    %v732 = vpack.c.b16 %v717, %v716
    %v733 = vpack.c.b16 %v719, %v718
    %v734 = vpack.c.b16 %v721, %v720
    %v735 = vpack.c.b16 %v723, %v722
    %v736 = vpack.c.b16 %v725, %v724
    %v737 = vpack.c.b16 %v727, %v726
    %v738 = vpack.c.b16 %v729, %v728
    %v739 = vpack.c.b16 %v731, %v730
    %748 = vmatpush.bf16.msra.mxu0 %v739
    %749 = vmatpush.bf16.msra.mxu0 %v738
    %750 = vmatpush.bf16.msra.mxu0 %v737
    %751 = vmatpush.bf16.msra.mxu0 %v736
    %752 = vmatpush.bf16.msra.mxu0 %v735
    %753 = vmatpush.bf16.msra.mxu0 %v734
    %754 = vmatpush.bf16.msra.mxu0 %v733
    %755 = vmatpush.bf16.msra.mxu0 %v732
    %756 = vmatmul.bf16.gmra.mxu0 %v683
    %v757 = vpop.f32.mrf.mxu0
    %v758 = vadd.f32 0.0, %v757
    %v759 = vpop.f32.mrf.mxu0
    %v760 = vadd.f32 0.0, %v759
    %761 = vdwg.mxu0
    %v762 = vadd.f32 %v546, %v758
    %v763 = vadd.f32 %v547, %v760
    %v764 = vperm.slane %v38, 5
    %v765 = vadd.f32 %v762, %v764
    %v766 = vadd.f32 %v763, %v764
    %s767 = scalar_lea.vmem %s6, 8
    %v768 = vld [vmem:[%s767] sm:$0xff]
    %v769 = vsel %vm39, %v765, 0.0
    %770 = vadd.xlane.f32.xlu0 %v769
    %v771 = vpop.xlane.xlu0 %770
    %v772 = vsel %vm39, %v766, 0.0
    %773 = vadd.xlane.f32.xlu0 %v772
    %v774 = vpop.xlane.xlu0 %773
    %v775 = vmul.f32 %v771, %v52
    %v776 = vmul.f32 %v774, %v52
    %v777 = vsub.f32 %v765, %v775
    %v778 = vsub.f32 %v766, %v776
    %v779 = vmul.f32 %v777, %v777
    %v780 = vmul.f32 %v778, %v778
    %v781 = vsel %vm39, %v779, 0.0
    %782 = vadd.xlane.f32.xlu0 %v781
    %v783 = vpop.xlane.xlu0 %782
    %v784 = vsel %vm39, %v780, 0.0
    %785 = vadd.xlane.f32.xlu0 %v784
    %v786 = vpop.xlane.xlu0 %785
    %v787 = vmul.f32 %v783, %v52
    %v788 = vmul.f32 %v786, %v52
    %v789 = vadd.f32 %v787, 1e-05
    %v790 = vadd.f32 %v788, 1e-05
    %v791 = vrsqrt.pop %v789
    %v792 = vmul.f32 %v791, %v789
    %v793 = vmul.f32 %v792, %v791
    %v794 = vmul.f32 0.5, %v793
    %v795 = vsub.f32 1.5, %v794
    %v796 = vmul.f32 %v791, %v795
    %v797 = vmul.f32 %v789, %v796
    %vm798 = vcmp.eq.f32.partialorder %v789, inf
    %v799 = vsel %vm798, %v789, %v797
    %vm800 = vcmp.eq.f32.partialorder %v789, 0.0
    %v801 = vand.u32 %v789, 2147483648
    %v802 = vsel %vm800, %v801, %v799
    %v803 = vrsqrt.pop %v790
    %v804 = vmul.f32 %v803, %v790
    %v805 = vmul.f32 %v804, %v803
    %v806 = vmul.f32 0.5, %v805
    %v807 = vsub.f32 1.5, %v806
    %v808 = vmul.f32 %v803, %v807
    %v809 = vmul.f32 %v790, %v808
    %vm810 = vcmp.eq.f32.partialorder %v790, inf
    %v811 = vsel %vm810, %v790, %v809
    %vm812 = vcmp.eq.f32.partialorder %v790, 0.0
    %v813 = vand.u32 %v790, 2147483648
    %v814 = vsel %vm812, %v813, %v811
    %v815 = vrcp.pop %v802
    %v816 = vmul.f32 %v802, %v815
    %v817 = vsub.f32 1.0, %v816
    %v818 = vmul.f32 %v815, %v817
    %v819 = vadd.f32 %v815, %v818
    %vm820 = vweird.f32 %v802
    %vm821 = vweird.f32 %v815
    %vm822 = vmor %vm820, %vm821
    %v823 = vsel %vm822, %v815, %v819
    %v824 = vand.u32 2147483647, %v802
    %vm825 = vcmp.eq.f32.partialorder %v824, 8.507059e+37
    %v826 = vand.u32 %v802, 2147483648
    %v827 = vor.u32 1.1754944e-38, %v826
    %v828 = vsel %vm825, %v827, %v823
    %v829 = vmul.f32 %v777, %v828
    %v830 = vrcp.pop %v814
    %v831 = vmul.f32 %v814, %v830
    %v832 = vsub.f32 1.0, %v831
    %v833 = vmul.f32 %v830, %v832
    %v834 = vadd.f32 %v830, %v833
    %vm835 = vweird.f32 %v814
    %vm836 = vweird.f32 %v830
    %vm837 = vmor %vm835, %vm836
    %v838 = vsel %vm837, %v830, %v834
    %v839 = vand.u32 2147483647, %v814
    %vm840 = vcmp.eq.f32.partialorder %v839, 8.507059e+37
    %v841 = vand.u32 %v814, 2147483648
    %v842 = vor.u32 1.1754944e-38, %v841
    %v843 = vsel %vm840, %v842, %v838
    %v844 = vmul.f32 %v778, %v843
    %v845 = vperm.slane %v768, 0
    %v846 = vmul.f32 %v829, %v845
    %v847 = vmul.f32 %v844, %v845
    %v848 = vperm.slane %v768, 1
    %v849 = vadd.f32 %v846, %v848
    %v850 = vadd.f32 %v847, %v848
    %v851 = vpack.c.bf16 %v850, %v849
    %s852 = scalar_lea.vmem %s2, 16
    %v853 = vld [vmem:[%s852] sm:$0xf]
    %v854 = vld [vmem:[%s852 + $0x4] sm:$0xf]
    %v855 = vld [vmem:[%s852 + $0x8] sm:$0xf]
    %v856 = vld [vmem:[%s852 + $0xc] sm:$0xf]
    %v861 = vunpack.c.l.b16 %v853
    %v862 = vunpack.c.l.b16 %v854
    %v863 = vunpack.c.l.b16 %v855
    %v864 = vunpack.c.l.b16 %v856
    %v865 = vpack.c.b16 %v862, %v861
    %v866 = vpack.c.b16 %v864, %v863
    %v870 = vsel %vm39, %v851, 0
    %872 = vmatpush.bf16.msra.mxu0 0
    %873 = vmatpush.bf16.msra.mxu0 0
    %874 = vmatpush.bf16.msra.mxu0 0
    %875 = vmatpush.bf16.msra.mxu0 0
    %876 = vmatpush.bf16.msra.mxu0 0
    %877 = vmatpush.bf16.msra.mxu0 0
    %878 = vmatpush.bf16.msra.mxu0 %v866
    %879 = vmatpush.bf16.msra.mxu0 %v865
    %880 = vmatmul.bf16.gmra.mxu0 %v870
    %v881 = vpop.f32.mrf.mxu0
    %v882 = vadd.f32 0.0, %v881
    %v883 = vpop.f32.mrf.mxu0
    %v884 = vadd.f32 0.0, %v883
    %885 = vdwg.mxu0
    %v886 = vpack.c.bf16 %v882, %v882
    %v887 = vpack.c.bf16 %v884, %v884
    %v890 = vunpack.c.l.b16 %v886
    %v891 = vunpack.c.l.b16 %v887
    %v892 = vpack.c.b16 %v891, %v890
    %893 = vrot.lane.b32.xlu0 %v892, 96
    %v894 = vpop.permute.xlu0 %893
    %v896 = vsel %vm172, %v892, 0
    %v899 = vsel %vm172, %v894, 0
    %901 = vmatpush.bf16.xpose.msra.mxu0 0
    %902 = vmatpush.bf16.xpose.msra.mxu0 0
    %903 = vmatpush.bf16.xpose.msra.mxu0 0
    %904 = vmatpush.bf16.xpose.msra.mxu0 0
    %905 = vmatpush.bf16.xpose.msra.mxu0 0
    %906 = vmatpush.bf16.xpose.msra.mxu0 0
    %907 = vmatpush.bf16.xpose.msra.mxu0 0
    %908 = vmatpush.bf16.xpose.msra.mxu0 %v899
    %909 = vmatmul.bf16.gmra.mxu0 %v896
    %v910 = vpop.f32.mrf.mxu0
    %v911 = vadd.f32 0.0, %v910
    %v912 = vpop.f32.mrf.mxu0
    %v913 = vadd.f32 0.0, %v912
    %914 = vdwg.mxu0
    %915 = vrot.lane.b32.xlu0 %v892, 120
    %v916 = vpop.permute.xlu0 %915
    %917 = vrot.lane.b32.xlu0 %v892, 88
    %v918 = vpop.permute.xlu0 %917
    %v920 = vsel %vm172, %v916, 0
    %v923 = vsel %vm172, %v918, 0
    %925 = vmatpush.bf16.xpose.msra.mxu0 0
    %926 = vmatpush.bf16.xpose.msra.mxu0 0
    %927 = vmatpush.bf16.xpose.msra.mxu0 0
    %928 = vmatpush.bf16.xpose.msra.mxu0 0
    %929 = vmatpush.bf16.xpose.msra.mxu0 0
    %930 = vmatpush.bf16.xpose.msra.mxu0 0
    %931 = vmatpush.bf16.xpose.msra.mxu0 0
    %932 = vmatpush.bf16.xpose.msra.mxu0 %v923
    %933 = vmatmul.bf16.gmra.mxu0 %v920
    %v934 = vpop.f32.mrf.mxu0
    %v935 = vadd.f32 0.0, %v934
    %v936 = vpop.f32.mrf.mxu0
    %v937 = vadd.f32 0.0, %v936
    %938 = vdwg.mxu0
    %939 = vrot.lane.b32.xlu0 %v892, 112
    %v940 = vpop.permute.xlu0 %939
    %941 = vrot.lane.b32.xlu0 %v892, 80
    %v942 = vpop.permute.xlu0 %941
    %v944 = vsel %vm172, %v940, 0
    %v947 = vsel %vm172, %v942, 0
    %949 = vmatpush.bf16.xpose.msra.mxu0 0
    %950 = vmatpush.bf16.xpose.msra.mxu0 0
    %951 = vmatpush.bf16.xpose.msra.mxu0 0
    %952 = vmatpush.bf16.xpose.msra.mxu0 0
    %953 = vmatpush.bf16.xpose.msra.mxu0 0
    %954 = vmatpush.bf16.xpose.msra.mxu0 0
    %955 = vmatpush.bf16.xpose.msra.mxu0 0
    %956 = vmatpush.bf16.xpose.msra.mxu0 %v947
    %957 = vmatmul.bf16.gmra.mxu0 %v944
    %v958 = vpop.f32.mrf.mxu0
    %v959 = vadd.f32 0.0, %v958
    %v960 = vpop.f32.mrf.mxu0
    %v961 = vadd.f32 0.0, %v960
    %962 = vdwg.mxu0
    %963 = vrot.lane.b32.xlu0 %v892, 104
    %v964 = vpop.permute.xlu0 %963
    %965 = vrot.lane.b32.xlu0 %v892, 72
    %v966 = vpop.permute.xlu0 %965
    %v968 = vsel %vm172, %v964, 0
    %v971 = vsel %vm172, %v966, 0
    %973 = vmatpush.bf16.xpose.msra.mxu0 0
    %974 = vmatpush.bf16.xpose.msra.mxu0 0
    %975 = vmatpush.bf16.xpose.msra.mxu0 0
    %976 = vmatpush.bf16.xpose.msra.mxu0 0
    %977 = vmatpush.bf16.xpose.msra.mxu0 0
    %978 = vmatpush.bf16.xpose.msra.mxu0 0
    %979 = vmatpush.bf16.xpose.msra.mxu0 0
    %980 = vmatpush.bf16.xpose.msra.mxu0 %v971
    %981 = vmatmul.bf16.gmra.mxu0 %v968
    %v982 = vpop.f32.mrf.mxu0
    %v983 = vadd.f32 0.0, %v982
    %v984 = vpop.f32.mrf.mxu0
    %v985 = vadd.f32 0.0, %v984
    %986 = vdwg.mxu0
    %v987 = vmul.f32 %v911, 0.35355338
    %v988 = vmul.f32 %v913, 0.35355338
    %v989 = vmul.f32 %v935, 0.35355338
    %v990 = vmul.f32 %v937, 0.35355338
    %v991 = vmul.f32 %v959, 0.35355338
    %v992 = vmul.f32 %v961, 0.35355338
    %v993 = vmul.f32 %v983, 0.35355338
    %v994 = vmul.f32 %v985, 0.35355338
    %v995 = vadd.f32 %v987, %v36
    %v996 = vadd.f32 %v988, %v37
    %v997 = vadd.f32 %v989, %v36
    %v998 = vadd.f32 %v990, %v37
    %v999 = vadd.f32 %v991, %v36
    %v1000 = vadd.f32 %v992, %v37
    %v1001 = vadd.f32 %v993, %v36
    %v1002 = vadd.f32 %v994, %v37
    %v1003 = vsel %vm281, %v995, -inf
    %1004 = vmax.xlane.f32.xlu0 %v1003
    %v1005 = vpop.xlane.xlu0 %1004
    %v1006 = vsel %vm281, %v996, -inf
    %1007 = vmax.xlane.f32.xlu0 %v1006
    %v1008 = vpop.xlane.xlu0 %1007
    %v1009 = vsel %vm281, %v997, -inf
    %1010 = vmax.xlane.f32.xlu0 %v1009
    %v1011 = vpop.xlane.xlu0 %1010
    %v1012 = vsel %vm281, %v998, -inf
    %1013 = vmax.xlane.f32.xlu0 %v1012
    %v1014 = vpop.xlane.xlu0 %1013
    %v1015 = vsel %vm281, %v999, -inf
    %1016 = vmax.xlane.f32.xlu0 %v1015
    %v1017 = vpop.xlane.xlu0 %1016
    %v1018 = vsel %vm281, %v1000, -inf
    %1019 = vmax.xlane.f32.xlu0 %v1018
    %v1020 = vpop.xlane.xlu0 %1019
    %v1021 = vsel %vm281, %v1001, -inf
    %1022 = vmax.xlane.f32.xlu0 %v1021
    %v1023 = vpop.xlane.xlu0 %1022
    %v1024 = vsel %vm281, %v1002, -inf
    %1025 = vmax.xlane.f32.xlu0 %v1024
    %v1026 = vpop.xlane.xlu0 %1025
    %v1027 = vsub.f32 %v995, %v1005
    %v1028 = vsub.f32 %v996, %v1008
    %v1029 = vsub.f32 %v997, %v1011
    %v1030 = vsub.f32 %v998, %v1014
    %v1031 = vsub.f32 %v999, %v1017
    %v1032 = vsub.f32 %v1000, %v1020
    %v1033 = vsub.f32 %v1001, %v1023
    %v1034 = vsub.f32 %v1002, %v1026
    %v1035 = vmul.f32 %v1027, 1.442695
    %v1036 = vpow.pop %v1035
    %v1037 = vmul.f32 %v1028, 1.442695
    %v1038 = vpow.pop %v1037
    %v1039 = vmul.f32 %v1029, 1.442695
    %v1040 = vpow.pop %v1039
    %v1041 = vmul.f32 %v1030, 1.442695
    %v1042 = vpow.pop %v1041
    %v1043 = vmul.f32 %v1031, 1.442695
    %v1044 = vpow.pop %v1043
    %v1045 = vmul.f32 %v1032, 1.442695
    %v1046 = vpow.pop %v1045
    %v1047 = vmul.f32 %v1033, 1.442695
    %v1048 = vpow.pop %v1047
    %v1049 = vmul.f32 %v1034, 1.442695
    %v1050 = vpow.pop %v1049
    %v1051 = vsel %vm281, %v1036, 0.0
    %1052 = vadd.xlane.f32.xlu0 %v1051
    %v1053 = vpop.xlane.xlu0 %1052
    %v1054 = vsel %vm281, %v1038, 0.0
    %1055 = vadd.xlane.f32.xlu0 %v1054
    %v1056 = vpop.xlane.xlu0 %1055
    %v1057 = vsel %vm281, %v1040, 0.0
    %1058 = vadd.xlane.f32.xlu0 %v1057
    %v1059 = vpop.xlane.xlu0 %1058
    %v1060 = vsel %vm281, %v1042, 0.0
    %1061 = vadd.xlane.f32.xlu0 %v1060
    %v1062 = vpop.xlane.xlu0 %1061
    %v1063 = vsel %vm281, %v1044, 0.0
    %1064 = vadd.xlane.f32.xlu0 %v1063
    %v1065 = vpop.xlane.xlu0 %1064
    %v1066 = vsel %vm281, %v1046, 0.0
    %1067 = vadd.xlane.f32.xlu0 %v1066
    %v1068 = vpop.xlane.xlu0 %1067
    %v1069 = vsel %vm281, %v1048, 0.0
    %1070 = vadd.xlane.f32.xlu0 %v1069
    %v1071 = vpop.xlane.xlu0 %1070
    %v1072 = vsel %vm281, %v1050, 0.0
    %1073 = vadd.xlane.f32.xlu0 %v1072
    %v1074 = vpop.xlane.xlu0 %1073
    %v1075 = vrcp.pop %v1053
    %v1076 = vrcp.pop %v1056
    %v1077 = vrcp.pop %v1059
    %v1078 = vrcp.pop %v1062
    %v1079 = vrcp.pop %v1065
    %v1080 = vrcp.pop %v1068
    %v1081 = vrcp.pop %v1071
    %v1082 = vrcp.pop %v1074
    %v1083 = vmul.f32 %v1036, %v1075
    %v1084 = vmul.f32 %v1038, %v1076
    %v1085 = vmul.f32 %v1040, %v1077
    %v1086 = vmul.f32 %v1042, %v1078
    %v1087 = vmul.f32 %v1044, %v1079
    %v1088 = vmul.f32 %v1046, %v1080
    %v1089 = vmul.f32 %v1048, %v1081
    %v1090 = vmul.f32 %v1050, %v1082
    %v1091 = vpack.c.bf16 %v1083, %v1083
    %v1092 = vpack.c.bf16 %v1084, %v1084
    %v1093 = vpack.c.bf16 %v1085, %v1085
    %v1094 = vpack.c.bf16 %v1086, %v1086
    %v1095 = vpack.c.bf16 %v1087, %v1087
    %v1096 = vpack.c.bf16 %v1088, %v1088
    %v1097 = vpack.c.bf16 %v1089, %v1089
    %v1098 = vpack.c.bf16 %v1090, %v1090
    %v1101 = vunpack.c.l.b16 %v1091
    %v1102 = vunpack.c.l.b16 %v1092
    %v1103 = vpack.c.b16 %v1102, %v1101
    %1104 = vrot.lane.b32.xlu0 %v892, 64
    %v1105 = vpop.permute.xlu0 %1104
    %v1108 = vsel %vm281, %v1103, 0
    %1110 = vmatpush.bf16.msra.mxu0 0
    %1111 = vmatpush.bf16.msra.mxu0 0
    %1112 = vmatpush.bf16.msra.mxu0 0
    %1113 = vmatpush.bf16.msra.mxu0 0
    %1114 = vmatpush.bf16.msra.mxu0 0
    %1115 = vmatpush.bf16.msra.mxu0 0
    %1116 = vmatpush.bf16.msra.mxu0 0
    %1117 = vmatpush.bf16.msra.mxu0 %v1105
    %1118 = vmatmul.bf16.gmra.mxu0 %v1108
    %v1119 = vpop.f32.mrf.mxu0
    %v1120 = vadd.f32 0.0, %v1119
    %v1121 = vpop.f32.mrf.mxu0
    %v1122 = vadd.f32 0.0, %v1121
    %1123 = vdwg.mxu0
    %v1126 = vunpack.c.l.b16 %v1093
    %v1127 = vunpack.c.l.b16 %v1094
    %v1128 = vpack.c.b16 %v1127, %v1126
    %1129 = vrot.lane.b32.xlu0 %v892, 56
    %v1130 = vpop.permute.xlu0 %1129
    %v1133 = vsel %vm281, %v1128, 0
    %1135 = vmatpush.bf16.msra.mxu0 0
    %1136 = vmatpush.bf16.msra.mxu0 0
    %1137 = vmatpush.bf16.msra.mxu0 0
    %1138 = vmatpush.bf16.msra.mxu0 0
    %1139 = vmatpush.bf16.msra.mxu0 0
    %1140 = vmatpush.bf16.msra.mxu0 0
    %1141 = vmatpush.bf16.msra.mxu0 0
    %1142 = vmatpush.bf16.msra.mxu0 %v1130
    %1143 = vmatmul.bf16.gmra.mxu0 %v1133
    %v1144 = vpop.f32.mrf.mxu0
    %v1145 = vadd.f32 0.0, %v1144
    %v1146 = vpop.f32.mrf.mxu0
    %v1147 = vadd.f32 0.0, %v1146
    %1148 = vdwg.mxu0
    %v1151 = vunpack.c.l.b16 %v1095
    %v1152 = vunpack.c.l.b16 %v1096
    %v1153 = vpack.c.b16 %v1152, %v1151
    %1154 = vrot.lane.b32.xlu0 %v892, 48
    %v1155 = vpop.permute.xlu0 %1154
    %v1158 = vsel %vm281, %v1153, 0
    %1160 = vmatpush.bf16.msra.mxu0 0
    %1161 = vmatpush.bf16.msra.mxu0 0
    %1162 = vmatpush.bf16.msra.mxu0 0
    %1163 = vmatpush.bf16.msra.mxu0 0
    %1164 = vmatpush.bf16.msra.mxu0 0
    %1165 = vmatpush.bf16.msra.mxu0 0
    %1166 = vmatpush.bf16.msra.mxu0 0
    %1167 = vmatpush.bf16.msra.mxu0 %v1155
    %1168 = vmatmul.bf16.gmra.mxu0 %v1158
    %v1169 = vpop.f32.mrf.mxu0
    %v1170 = vadd.f32 0.0, %v1169
    %v1171 = vpop.f32.mrf.mxu0
    %v1172 = vadd.f32 0.0, %v1171
    %1173 = vdwg.mxu0
    %v1176 = vunpack.c.l.b16 %v1097
    %v1177 = vunpack.c.l.b16 %v1098
    %v1178 = vpack.c.b16 %v1177, %v1176
    %1179 = vrot.lane.b32.xlu0 %v892, 40
    %v1180 = vpop.permute.xlu0 %1179
    %v1183 = vsel %vm281, %v1178, 0
    %1185 = vmatpush.bf16.msra.mxu0 0
    %1186 = vmatpush.bf16.msra.mxu0 0
    %1187 = vmatpush.bf16.msra.mxu0 0
    %1188 = vmatpush.bf16.msra.mxu0 0
    %1189 = vmatpush.bf16.msra.mxu0 0
    %1190 = vmatpush.bf16.msra.mxu0 0
    %1191 = vmatpush.bf16.msra.mxu0 0
    %1192 = vmatpush.bf16.msra.mxu0 %v1180
    %1193 = vmatmul.bf16.gmra.mxu0 %v1183
    %v1194 = vpop.f32.mrf.mxu0
    %v1195 = vadd.f32 0.0, %v1194
    %v1196 = vpop.f32.mrf.mxu0
    %v1197 = vadd.f32 0.0, %v1196
    %1198 = vdwg.mxu0
    %1201 = vrot.lane.b32.xlu0 %v1145, 8
    %v1202 = vpop.permute.xlu0 %1201
    %1203 = vrot.lane.b32.xlu0 %v1147, 8
    %v1204 = vpop.permute.xlu0 %1203
    %1209 = vrot.lane.b32.xlu0 %v1170, 16
    %v1210 = vpop.permute.xlu0 %1209
    %1211 = vrot.lane.b32.xlu0 %v1172, 16
    %v1212 = vpop.permute.xlu0 %1211
    %1217 = vrot.lane.b32.xlu0 %v1195, 24
    %v1218 = vpop.permute.xlu0 %1217
    %1219 = vrot.lane.b32.xlu0 %v1197, 24
    %v1220 = vpop.permute.xlu0 %1219
    %v1223 = vsel %vm172, %v1120, %v1202
    %v1224 = vsel %vm172, %v1122, %v1204
    %v1225 = vsel %vm281, %v1223, %v1210
    %v1226 = vsel %vm281, %v1224, %v1212
    %v1227 = vsel %vm506, %v1225, %v1218
    %v1228 = vsel %vm506, %v1226, %v1220
    %v1229 = vpack.c.bf16 %v1228, %v1227
    %s1230 = scalar_lea.vmem %s3, 16
    %v1231 = vld [vmem:[%s1230] sm:$0xf]
    %v1232 = vld [vmem:[%s1230 + $0x4] sm:$0xf]
    %v1233 = vld [vmem:[%s1230 + $0x8] sm:$0xf]
    %v1234 = vld [vmem:[%s1230 + $0xc] sm:$0xf]
    %v1239 = vunpack.c.l.b16 %v1231
    %v1240 = vunpack.c.l.b16 %v1232
    %v1241 = vunpack.c.l.b16 %v1233
    %v1242 = vunpack.c.l.b16 %v1234
    %v1243 = vpack.c.b16 %v1240, %v1239
    %v1244 = vpack.c.b16 %v1242, %v1241
    %v1248 = vsel %vm39, %v1229, 0
    %1250 = vmatpush.bf16.msra.mxu0 0
    %1251 = vmatpush.bf16.msra.mxu0 0
    %1252 = vmatpush.bf16.msra.mxu0 0
    %1253 = vmatpush.bf16.msra.mxu0 0
    %1254 = vmatpush.bf16.msra.mxu0 0
    %1255 = vmatpush.bf16.msra.mxu0 0
    %1256 = vmatpush.bf16.msra.mxu0 %v1244
    %1257 = vmatpush.bf16.msra.mxu0 %v1243
    %1258 = vmatmul.bf16.gmra.mxu0 %v1248
    %v1259 = vpop.f32.mrf.mxu0
    %v1260 = vadd.f32 0.0, %v1259
    %v1261 = vpop.f32.mrf.mxu0
    %v1262 = vadd.f32 0.0, %v1261
    %1263 = vdwg.mxu0
    %v1264 = vadd.f32 %v765, %v1260
    %v1265 = vadd.f32 %v766, %v1262
    %v1266 = vperm.slane %v768, 4
    %v1267 = vadd.f32 %v1264, %v1266
    %v1268 = vadd.f32 %v1265, %v1266
    %v1269 = vsel %vm39, %v1267, 0.0
    %1270 = vadd.xlane.f32.xlu0 %v1269
    %v1271 = vpop.xlane.xlu0 %1270
    %v1272 = vsel %vm39, %v1268, 0.0
    %1273 = vadd.xlane.f32.xlu0 %v1272
    %v1274 = vpop.xlane.xlu0 %1273
    %v1275 = vmul.f32 %v1271, %v52
    %v1276 = vmul.f32 %v1274, %v52
    %v1277 = vsub.f32 %v1267, %v1275
    %v1278 = vsub.f32 %v1268, %v1276
    %v1279 = vmul.f32 %v1277, %v1277
    %v1280 = vmul.f32 %v1278, %v1278
    %v1281 = vsel %vm39, %v1279, 0.0
    %1282 = vadd.xlane.f32.xlu0 %v1281
    %v1283 = vpop.xlane.xlu0 %1282
    %v1284 = vsel %vm39, %v1280, 0.0
    %1285 = vadd.xlane.f32.xlu0 %v1284
    %v1286 = vpop.xlane.xlu0 %1285
    %v1287 = vmul.f32 %v1283, %v52
    %v1288 = vmul.f32 %v1286, %v52
    %v1289 = vadd.f32 %v1287, 1e-05
    %v1290 = vadd.f32 %v1288, 1e-05
    %v1291 = vrsqrt.pop %v1289
    %v1292 = vmul.f32 %v1291, %v1289
    %v1293 = vmul.f32 %v1292, %v1291
    %v1294 = vmul.f32 0.5, %v1293
    %v1295 = vsub.f32 1.5, %v1294
    %v1296 = vmul.f32 %v1291, %v1295
    %v1297 = vmul.f32 %v1289, %v1296
    %vm1298 = vcmp.eq.f32.partialorder %v1289, inf
    %v1299 = vsel %vm1298, %v1289, %v1297
    %vm1300 = vcmp.eq.f32.partialorder %v1289, 0.0
    %v1301 = vand.u32 %v1289, 2147483648
    %v1302 = vsel %vm1300, %v1301, %v1299
    %v1303 = vrsqrt.pop %v1290
    %v1304 = vmul.f32 %v1303, %v1290
    %v1305 = vmul.f32 %v1304, %v1303
    %v1306 = vmul.f32 0.5, %v1305
    %v1307 = vsub.f32 1.5, %v1306
    %v1308 = vmul.f32 %v1303, %v1307
    %v1309 = vmul.f32 %v1290, %v1308
    %vm1310 = vcmp.eq.f32.partialorder %v1290, inf
    %v1311 = vsel %vm1310, %v1290, %v1309
    %vm1312 = vcmp.eq.f32.partialorder %v1290, 0.0
    %v1313 = vand.u32 %v1290, 2147483648
    %v1314 = vsel %vm1312, %v1313, %v1311
    %v1315 = vrcp.pop %v1302
    %v1316 = vmul.f32 %v1302, %v1315
    %v1317 = vsub.f32 1.0, %v1316
    %v1318 = vmul.f32 %v1315, %v1317
    %v1319 = vadd.f32 %v1315, %v1318
    %vm1320 = vweird.f32 %v1302
    %vm1321 = vweird.f32 %v1315
    %vm1322 = vmor %vm1320, %vm1321
    %v1323 = vsel %vm1322, %v1315, %v1319
    %v1324 = vand.u32 2147483647, %v1302
    %vm1325 = vcmp.eq.f32.partialorder %v1324, 8.507059e+37
    %v1326 = vand.u32 %v1302, 2147483648
    %v1327 = vor.u32 1.1754944e-38, %v1326
    %v1328 = vsel %vm1325, %v1327, %v1323
    %v1329 = vmul.f32 %v1277, %v1328
    %v1330 = vrcp.pop %v1314
    %v1331 = vmul.f32 %v1314, %v1330
    %v1332 = vsub.f32 1.0, %v1331
    %v1333 = vmul.f32 %v1330, %v1332
    %v1334 = vadd.f32 %v1330, %v1333
    %vm1335 = vweird.f32 %v1314
    %vm1336 = vweird.f32 %v1330
    %vm1337 = vmor %vm1335, %vm1336
    %v1338 = vsel %vm1337, %v1330, %v1334
    %v1339 = vand.u32 2147483647, %v1314
    %vm1340 = vcmp.eq.f32.partialorder %v1339, 8.507059e+37
    %v1341 = vand.u32 %v1314, 2147483648
    %v1342 = vor.u32 1.1754944e-38, %v1341
    %v1343 = vsel %vm1340, %v1342, %v1338
    %v1344 = vmul.f32 %v1278, %v1343
    %v1345 = vperm.slane %v768, 2
    %v1346 = vmul.f32 %v1329, %v1345
    %v1347 = vmul.f32 %v1344, %v1345
    %v1348 = vperm.slane %v768, 3
    %v1349 = vadd.f32 %v1346, %v1348
    %v1350 = vadd.f32 %v1347, %v1348
    %v1351 = vpack.c.bf16 %v1350, %v1349
    %s1352 = scalar_lea.vmem %s4, 16
    %v1353 = vld [vmem:[%s1352] sm:$0xf]
    %v1354 = vld [vmem:[%s1352 + $0x4] sm:$0xf]
    %v1355 = vld [vmem:[%s1352 + $0x8] sm:$0xf]
    %v1356 = vld [vmem:[%s1352 + $0xc] sm:$0xf]
    %v1357 = vperm.slane %v768, 6
    %v1362 = vunpack.c.l.b16 %v1353
    %v1363 = vunpack.c.l.b16 %v1354
    %v1364 = vunpack.c.l.b16 %v1355
    %v1365 = vunpack.c.l.b16 %v1356
    %v1366 = vpack.c.b16 %v1363, %v1362
    %v1367 = vpack.c.b16 %v1365, %v1364
    %v1371 = vsel %vm39, %v1351, 0
    %1373 = vmatpush.bf16.msra.mxu0 0
    %1374 = vmatpush.bf16.msra.mxu0 0
    %1375 = vmatpush.bf16.msra.mxu0 0
    %1376 = vmatpush.bf16.msra.mxu0 0
    %1377 = vmatpush.bf16.msra.mxu0 0
    %1378 = vmatpush.bf16.msra.mxu0 0
    %1379 = vmatpush.bf16.msra.mxu0 %v1367
    %1380 = vmatpush.bf16.msra.mxu0 %v1366
    %1381 = vmatmul.bf16.gmra.mxu0 %v1371
    %v1382 = vpop.f32.mrf.mxu0
    %v1383 = vadd.f32 %v1357, %v1382
    %v1384 = vpop.f32.mrf.mxu0
    %v1385 = vadd.f32 %v1357, %v1384
    %1386 = vdwg.mxu0
    %v1387 = vmul.f32 %v1383, 0.5
    %v1388 = vmul.f32 %v1385, 0.5
    %v1389 = vmul.f32 %v1383, %v1383
    %v1390 = vmul.f32 %v1385, %v1385
    %v1391 = vmul.f32 %v1383, %v1389
    %v1392 = vmul.f32 %v1385, %v1390
    %v1393 = vmul.f32 %v1391, 0.044715
    %v1394 = vmul.f32 %v1392, 0.044715
    %v1395 = vadd.f32 %v1383, %v1393
    %v1396 = vadd.f32 %v1385, %v1394
    %v1397 = vmul.f32 %v1395, 0.7978846
    %v1398 = vmul.f32 %v1396, 0.7978846
    %v1399 = vtanh.pop %v1397
    %v1400 = vtanh.pop %v1398
    %v1401 = vadd.f32 %v1399, 1.0
    %v1402 = vadd.f32 %v1400, 1.0
    %v1403 = vmul.f32 %v1387, %v1401
    %v1404 = vmul.f32 %v1388, %v1402
    %v1405 = vpack.c.bf16 %v1404, %v1403
    %s1406 = scalar_lea.vmem %s5, 64
    %v1407 = vld [vmem:[%s1406] sm:$0xf]
    %v1408 = vld [vmem:[%s1406 + $0x4] sm:$0xf]
    %v1409 = vld [vmem:[%s1406 + $0x8] sm:$0xf]
    %v1410 = vld [vmem:[%s1406 + $0xc] sm:$0xf]
    %v1411 = vld [vmem:[%s1406 + $0x10] sm:$0xf]
    %v1412 = vld [vmem:[%s1406 + $0x14] sm:$0xf]
    %v1413 = vld [vmem:[%s1406 + $0x18] sm:$0xf]
    %v1414 = vld [vmem:[%s1406 + $0x1c] sm:$0xf]
    %v1415 = vld [vmem:[%s1406 + $0x20] sm:$0xf]
    %v1416 = vld [vmem:[%s1406 + $0x24] sm:$0xf]
    %v1417 = vld [vmem:[%s1406 + $0x28] sm:$0xf]
    %v1418 = vld [vmem:[%s1406 + $0x2c] sm:$0xf]
    %v1419 = vld [vmem:[%s1406 + $0x30] sm:$0xf]
    %v1420 = vld [vmem:[%s1406 + $0x34] sm:$0xf]
    %v1421 = vld [vmem:[%s1406 + $0x38] sm:$0xf]
    %v1422 = vld [vmem:[%s1406 + $0x3c] sm:$0xf]
    %v1439 = vunpack.c.l.b16 %v1407
    %v1440 = vunpack.c.l.b16 %v1408
    %v1441 = vunpack.c.l.b16 %v1409
    %v1442 = vunpack.c.l.b16 %v1410
    %v1443 = vunpack.c.l.b16 %v1411
    %v1444 = vunpack.c.l.b16 %v1412
    %v1445 = vunpack.c.l.b16 %v1413
    %v1446 = vunpack.c.l.b16 %v1414
    %v1447 = vunpack.c.l.b16 %v1415
    %v1448 = vunpack.c.l.b16 %v1416
    %v1449 = vunpack.c.l.b16 %v1417
    %v1450 = vunpack.c.l.b16 %v1418
    %v1451 = vunpack.c.l.b16 %v1419
    %v1452 = vunpack.c.l.b16 %v1420
    %v1453 = vunpack.c.l.b16 %v1421
    %v1454 = vunpack.c.l.b16 %v1422
    %v1455 = vpack.c.b16 %v1440, %v1439
    %v1456 = vpack.c.b16 %v1442, %v1441
    %v1457 = vpack.c.b16 %v1444, %v1443
    %v1458 = vpack.c.b16 %v1446, %v1445
    %v1459 = vpack.c.b16 %v1448, %v1447
    %v1460 = vpack.c.b16 %v1450, %v1449
    %v1461 = vpack.c.b16 %v1452, %v1451
    %v1462 = vpack.c.b16 %v1454, %v1453
    %1471 = vmatpush.bf16.msra.mxu0 %v1462
    %1472 = vmatpush.bf16.msra.mxu0 %v1461
    %1473 = vmatpush.bf16.msra.mxu0 %v1460
    %1474 = vmatpush.bf16.msra.mxu0 %v1459
    %1475 = vmatpush.bf16.msra.mxu0 %v1458
    %1476 = vmatpush.bf16.msra.mxu0 %v1457
    %1477 = vmatpush.bf16.msra.mxu0 %v1456
    %1478 = vmatpush.bf16.msra.mxu0 %v1455
    %1479 = vmatmul.bf16.gmra.mxu0 %v1405
    %v1480 = vpop.f32.mrf.mxu0
    %v1481 = vadd.f32 0.0, %v1480
    %v1482 = vpop.f32.mrf.mxu0
    %v1483 = vadd.f32 0.0, %v1482
    %1484 = vdwg.mxu0
    %v1485 = vadd.f32 %v1267, %v1481
    %v1486 = vadd.f32 %v1268, %v1483
    %v1487 = vperm.slane %v768, 5
    %v1488 = vadd.f32 %v1485, %v1487
    %v1489 = vadd.f32 %v1486, %v1487
    %v1490 = vld [vmem:[%s7] sm:$0x1]
    %v1491 = vld [vmem:[%s7 + $0x1] sm:$0x1]
    %v1492 = vsel %vm39, %v1488, 0.0
    %1493 = vadd.xlane.f32.xlu0 %v1492
    %v1494 = vpop.xlane.xlu0 %1493
    %v1495 = vsel %vm39, %v1489, 0.0
    %1496 = vadd.xlane.f32.xlu0 %v1495
    %v1497 = vpop.xlane.xlu0 %1496
    %v1498 = vmul.f32 %v1494, %v52
    %v1499 = vmul.f32 %v1497, %v52
    %v1500 = vsub.f32 %v1488, %v1498
    %v1501 = vsub.f32 %v1489, %v1499
    %v1502 = vmul.f32 %v1500, %v1500
    %v1503 = vmul.f32 %v1501, %v1501
    %v1504 = vsel %vm39, %v1502, 0.0
    %1505 = vadd.xlane.f32.xlu0 %v1504
    %v1506 = vpop.xlane.xlu0 %1505
    %v1507 = vsel %vm39, %v1503, 0.0
    %1508 = vadd.xlane.f32.xlu0 %v1507
    %v1509 = vpop.xlane.xlu0 %1508
    %v1510 = vmul.f32 %v1506, %v52
    %v1511 = vmul.f32 %v1509, %v52
    %v1512 = vadd.f32 %v1510, 1e-05
    %v1513 = vadd.f32 %v1511, 1e-05
    %v1514 = vrsqrt.pop %v1512
    %v1515 = vmul.f32 %v1514, %v1512
    %v1516 = vmul.f32 %v1515, %v1514
    %v1517 = vmul.f32 0.5, %v1516
    %v1518 = vsub.f32 1.5, %v1517
    %v1519 = vmul.f32 %v1514, %v1518
    %v1520 = vmul.f32 %v1512, %v1519
    %vm1521 = vcmp.eq.f32.partialorder %v1512, inf
    %v1522 = vsel %vm1521, %v1512, %v1520
    %vm1523 = vcmp.eq.f32.partialorder %v1512, 0.0
    %v1524 = vand.u32 %v1512, 2147483648
    %v1525 = vsel %vm1523, %v1524, %v1522
    %v1526 = vrsqrt.pop %v1513
    %v1527 = vmul.f32 %v1526, %v1513
    %v1528 = vmul.f32 %v1527, %v1526
    %v1529 = vmul.f32 0.5, %v1528
    %v1530 = vsub.f32 1.5, %v1529
    %v1531 = vmul.f32 %v1526, %v1530
    %v1532 = vmul.f32 %v1513, %v1531
    %vm1533 = vcmp.eq.f32.partialorder %v1513, inf
    %v1534 = vsel %vm1533, %v1513, %v1532
    %vm1535 = vcmp.eq.f32.partialorder %v1513, 0.0
    %v1536 = vand.u32 %v1513, 2147483648
    %v1537 = vsel %vm1535, %v1536, %v1534
    %v1538 = vrcp.pop %v1525
    %v1539 = vmul.f32 %v1525, %v1538
    %v1540 = vsub.f32 1.0, %v1539
    %v1541 = vmul.f32 %v1538, %v1540
    %v1542 = vadd.f32 %v1538, %v1541
    %vm1543 = vweird.f32 %v1525
    %vm1544 = vweird.f32 %v1538
    %vm1545 = vmor %vm1543, %vm1544
    %v1546 = vsel %vm1545, %v1538, %v1542
    %v1547 = vand.u32 2147483647, %v1525
    %vm1548 = vcmp.eq.f32.partialorder %v1547, 8.507059e+37
    %v1549 = vand.u32 %v1525, 2147483648
    %v1550 = vor.u32 1.1754944e-38, %v1549
    %v1551 = vsel %vm1548, %v1550, %v1546
    %v1552 = vmul.f32 %v1500, %v1551
    %v1553 = vrcp.pop %v1537
    %v1554 = vmul.f32 %v1537, %v1553
    %v1555 = vsub.f32 1.0, %v1554
    %v1556 = vmul.f32 %v1553, %v1555
    %v1557 = vadd.f32 %v1553, %v1556
    %vm1558 = vweird.f32 %v1537
    %vm1559 = vweird.f32 %v1553
    %vm1560 = vmor %vm1558, %vm1559
    %v1561 = vsel %vm1560, %v1553, %v1557
    %v1562 = vand.u32 2147483647, %v1537
    %vm1563 = vcmp.eq.f32.partialorder %v1562, 8.507059e+37
    %v1564 = vand.u32 %v1537, 2147483648
    %v1565 = vor.u32 1.1754944e-38, %v1564
    %v1566 = vsel %vm1563, %v1565, %v1561
    %v1567 = vmul.f32 %v1501, %v1566
    %v1568 = vperm.slane %v1490, 0
    %v1569 = vmul.f32 %v1552, %v1568
    %v1570 = vmul.f32 %v1567, %v1568
    %v1571 = vperm.slane %v1491, 0
    %v1572 = vadd.f32 %v1569, %v1571
    %v1573 = vadd.f32 %v1570, %v1571
    %v1574 = vpack.c.bf16 %v1573, %v1572
    %v1575 = vld [vmem:[%s8] sm:$0xf]
    %v1576 = vld [vmem:[%s8 + $0x4] sm:$0xf]
    %v1577 = vld [vmem:[%s8 + $0x8] sm:$0xf]
    %v1578 = vld [vmem:[%s8 + $0xc] sm:$0xf]
    %v1583 = vunpack.c.l.b16 %v1575
    %v1584 = vunpack.c.l.b16 %v1576
    %v1585 = vunpack.c.l.b16 %v1577
    %v1586 = vunpack.c.l.b16 %v1578
    %v1587 = vpack.c.b16 %v1584, %v1583
    %v1588 = vpack.c.b16 %v1586, %v1585
    %v1592 = vsel %vm39, %v1574, 0
    %1594 = vmatpush.bf16.msra.mxu0 0
    %1595 = vmatpush.bf16.msra.mxu0 0
    %1596 = vmatpush.bf16.msra.mxu0 0
    %1597 = vmatpush.bf16.msra.mxu0 0
    %1598 = vmatpush.bf16.msra.mxu0 0
    %1599 = vmatpush.bf16.msra.mxu0 0
    %1600 = vmatpush.bf16.msra.mxu0 %v1588
    %1601 = vmatpush.bf16.msra.mxu0 %v1587
    %1602 = vmatmul.bf16.gmra.mxu0 %v1592
    %v1603 = vpop.f32.mrf.mxu0
    %v1604 = vadd.f32 0.0, %v1603
    %v1605 = vpop.f32.mrf.mxu0
    %v1606 = vadd.f32 0.0, %v1605
    %1607 = vdwg.mxu0
    %1608 = vst [vmem:[#allocation2] sm:$0xff] %v1604
    %1609 = vst [vmem:[#allocation2 + $0x8] sm:$0xff] %v1606
    // Predicated region
    $region38: #{tpu_custom_call.1} parent=1 // pred_check
      _
    $region39: #{tpu_custom_call.1} parent=1 // pred_check_branch
      %1611 = sbr.rel (0) target = $region41
    $region40: #{tpu_custom_call.1} parent=1 // pred_region
      %1613 = vsyncadd [#allocation3], 0
      %s1614 = sshll.u32 [#allocation2], 4
      %s1615 = int_to_ptr.vmem [resolvable:$true] %s1614
      %s1616 = sshll.u32 %s9, 4
      %s1617 = int_to_ptr.hbm [resolvable:$true] %s1616
      %1622 = dma.vmem_to_hbm [thread:$0]  %s1615, 256, %s1617, [#allocation3], 128, 128, 8
    $region41: #{tpu_custom_call.1} parent=1 // pred_fallthru
      _
    // Predicated region
    $region42: #{tpu_custom_call.1} parent=1 // pred_check
      _
    $region43: #{tpu_custom_call.1} parent=1 // pred_check_branch
      %1624 = sbr.rel (0) target = $region45
    $region44: #{tpu_custom_call.1} parent=1 // pred_region
      %1626 = dma.done [#allocation3], 256
    $region45: #{tpu_custom_call.1} parent=1 // pred_fallthru
      _
    %1627 = vsyncpa [#allocation3], 1

</llo_original>
